<compile_context>
chip_gen: v7x
topology: tpu7x:2x2x1
jax: 0.10.0
libtpu: 0.0.40
codegen_flags: <defaults>
</compile_context>

<pallas_src>
import functools

import jax
import jax.numpy as jnp
from jax.experimental import pallas as pl
from jax.experimental.pallas import tpu as pltpu

EPS = 1e-5  # matches nn.InstanceNorm1d default eps


def _pick_tile(n, candidates=(512, 256, 128, 64, 32, 16, 8)):
    # Largest tile from `candidates` that evenly divides n; fall back to n
    # (full dim), which always satisfies the (8,128) block rule.
    for t in candidates:
        if t <= n and n % t == 0:
            return t
    return n


def _channel_tile(c):
    # Channel tiling for the norm needs no cross-tile reduction (the reduction
    # is over points).  Use lane-dense 128-wide tiles when the channel count
    # allows it; otherwise use the full (small) channel dim.
    return 128 if c % 128 == 0 else c


# ----------------------------- Pallas kernels -------------------------------

def _matmul_bias_kernel(x_ref, w_ref, b_ref, o_ref):
    # o = x @ w + b   (MXU hot path: 1x1 conv and point-conv contraction)
    acc = jnp.dot(x_ref[...], w_ref[...], preferred_element_type=jnp.float32)
    o_ref[...] = (acc + b_ref[...]).astype(o_ref.dtype)


def matmul_bias(x, w, b, out_dtype=None):
    # x: (M, K), w: (K, N), b: (N,).  Tiled over M rows so realistic B*N row
    # counts stay inside VMEM, pipeline, and shard across TensorCores.
    M, Kdim = x.shape
    N = w.shape[1]
    out_dtype = out_dtype or x.dtype
    tm = _pick_tile(M)
    return pl.pallas_call(
        _matmul_bias_kernel,
        out_shape=jax.ShapeDtypeStruct((M, N), out_dtype),
        grid=(M // tm,),
        in_specs=[pl.BlockSpec((tm, Kdim), lambda i: (i, 0)),
                  pl.BlockSpec((Kdim, N), lambda i: (0, 0)),
                  pl.BlockSpec((1, N), lambda i: (0, 0))],
        out_specs=pl.BlockSpec((tm, N), lambda i: (i, 0)),
        compiler_params=pltpu.CompilerParams(dimension_semantics=("parallel",)),
    )(x, w, b.reshape(1, N))


def _instance_norm_kernel(x_ref, g_ref, b_ref, o_ref, *, relu):
    # One (batch, channel-tile) block per grid step: normalize over points.
    x = x_ref[0].astype(jnp.float32)                    # (N, Ct)
    mean = jnp.mean(x, axis=0, keepdims=True)           # (1, Ct)
    centered = x - mean
    var = jnp.mean(centered * centered, axis=0, keepdims=True)
    y = centered * jax.lax.rsqrt(var + EPS)
    y = y * g_ref[...] + b_ref[...]
    if relu:
        y = jnp.maximum(y, 0.0)
    o_ref[0] = y.astype(o_ref.dtype)


def _instance_norm_res_relu_kernel(x_ref, r_ref, g_ref, b_ref, o_ref):
    # InstanceNorm(affine) fused with the Block epilogue: out = relu(residual + norm(x)).
    x = x_ref[0].astype(jnp.float32)                    # (N, Ct)
    mean = jnp.mean(x, axis=0, keepdims=True)
    centered = x - mean
    var = jnp.mean(centered * centered, axis=0, keepdims=True)
    y = centered * jax.lax.rsqrt(var + EPS)
    y = y * g_ref[...] + b_ref[...]
    y = jnp.maximum(y + r_ref[0].astype(jnp.float32), 0.0)
    o_ref[0] = y.astype(o_ref.dtype)


def _norm_specs(N, Ct):
    x_spec = pl.BlockSpec((1, N, Ct), lambda b, c: (b, 0, c))
    vec_spec = pl.BlockSpec((1, Ct), lambda b, c: (0, c))
    return x_spec, vec_spec


def instance_norm(x, gamma, beta, relu=False):
    # x: [B, N, C] ; gamma/beta: [C]
    # TODO(synk): for very large N on v7x (64 MiB VMEM) also tile the point
    # axis with a two-pass mean/var; single-pass blocks are fine on v5e/v6e.
    B, N, C = x.shape
    Ct = _channel_tile(C)
    x_spec, vec_spec = _norm_specs(N, Ct)
    return pl.pallas_call(
        functools.partial(_instance_norm_kernel, relu=relu),
        out_shape=jax.ShapeDtypeStruct((B, N, C), x.dtype),
        grid=(B, C // Ct),
        in_specs=[x_spec, vec_spec, vec_spec],
        out_specs=x_spec,
        compiler_params=pltpu.CompilerParams(
            dimension_semantics=("parallel", "parallel")),
    )(x, gamma.reshape(1, C), beta.reshape(1, C))


def instance_norm_res_relu(x, residual, gamma, beta):
    # Fused enc2 epilogue: relu(residual + InstanceNorm(x) * gamma + beta)
    B, N, C = x.shape
    Ct = _channel_tile(C)
    x_spec, vec_spec = _norm_specs(N, Ct)
    return pl.pallas_call(
        _instance_norm_res_relu_kernel,
        out_shape=jax.ShapeDtypeStruct((B, N, C), x.dtype),
        grid=(B, C // Ct),
        in_specs=[x_spec, x_spec, vec_spec, vec_spec],
        out_specs=x_spec,
        compiler_params=pltpu.CompilerParams(
            dimension_semantics=("parallel", "parallel")),
    )(x, residual, gamma.reshape(1, C), beta.reshape(1, C))


def _knn_kernel(q_ref, k_ref, idx_ref, *, K):
    # Fused pairwise-distance + top-K over a query tile.  Squared distances are
    # a single augmented MXU matmul (avoids an (N,1)->(1,N) relayout); then K
    # rounds of first-min selection (K is small), so only [TQ, K] int32 indices
    # ever leave VMEM — the full distance matrix never touches HBM.
    q = q_ref[0].astype(jnp.float32)                    # (TQ, 3)
    kp = k_ref[0].astype(jnp.float32)                   # (NK, 3)
    qq = jnp.sum(q * q, axis=-1, keepdims=True)         # (TQ, 1)
    kk = jnp.sum(kp * kp, axis=-1, keepdims=True)       # (NK, 1)
    lhs = jnp.concatenate([-2.0 * q, qq, jnp.ones_like(qq)], axis=-1)   # (TQ, 5)
    rhs = jnp.concatenate([kp, jnp.ones_like(kk), kk], axis=-1)         # (NK, 5)
    d = jax.lax.dot_general(lhs, rhs, (((1,), (1,)), ((), ())),
                            preferred_element_type=jnp.float32)         # (TQ, NK)
    TQ, NK = d.shape
    lane = jax.lax.broadcasted_iota(jnp.int32, (TQ, NK), 1)
    kcol = jax.lax.broadcasted_iota(jnp.int32, (TQ, K), 1)
    out = jnp.zeros((TQ, K), jnp.int32)
    for k in range(K):                                   # static unroll, K small
        dmin = jnp.min(d, axis=1, keepdims=True)                         # (TQ, 1)
        imin = jnp.min(jnp.where(d <= dmin, lane, NK), axis=1, keepdims=True)
        out = jnp.where(kcol == k, imin, out)
        d = jnp.where(lane == imin, jnp.inf, d)
    idx_ref[0] = out


def knn_search(points, K):
    # points: [B, N, 3] -> indices [B, N, K] (nearest first; includes self)
    # TODO(synk): for very large N, also tile the key axis on an 'arbitrary'
    # grid dimension with a running top-K in VMEM scratch to bound the (tq, N)
    # distance tile for v7x's 64 MiB VMEM.
    B, N, _ = points.shape
    tq = _pick_tile(N, (1024, 512, 256, 128, 64, 32, 16, 8))
    return pl.pallas_call(
        functools.partial(_knn_kernel, K=K),
        out_shape=jax.ShapeDtypeStruct((B, N, K), jnp.int32),
        grid=(B, N // tq),
        in_specs=[pl.BlockSpec((1, tq, 3), lambda b, i: (b, i, 0)),
                  pl.BlockSpec((1, N, 3), lambda b, i: (b, 0, 0))],
        out_specs=pl.BlockSpec((1, tq, K), lambda b, i: (b, i, 0)),
        compiler_params=pltpu.CompilerParams(
            dimension_semantics=("parallel", "parallel")),
    )(points, points)


# ------------------------------- glue ops ------------------------------------

def point_conv(x, idx, w, b):
    # ConvPoint-style conv:
    #   out[b,n,co] = bias[co] + sum_{ci,k} w[co,ci,k] * x[b, idx[b,n,k], ci]
    # x: [B, N, Cin], idx: [B, N, K], w: [Cout, Cin, K], b: [Cout]
    B, N, Cin = x.shape
    K = idx.shape[-1]
    Cout = w.shape[0]
    # TODO(synk): move this data-dependent gather into the Pallas kernel
    # (scalar-prefetch idx + in-kernel gather) to avoid the [B,N,K,Cin] HBM
    # round trip; for now it stays as an XLA gather feeding the Pallas matmul.
    nf = jax.vmap(lambda xb, ib: xb[ib])(x, idx)              # [B, N, K, Cin]
    nf = nf.reshape(B * N, K * Cin)                           # no activation relayout
    wf = jnp.transpose(w, (2, 1, 0)).reshape(K * Cin, Cout)   # tiny one-time weight transpose
    out = matmul_bias(nf, wf, b)
    return out.reshape(B, N, Cout)


def conv1x1(x, w, b):
    # nn.Conv1d(in, out, 1) on [B, N, Cin] layout
    B, N, Cin = x.shape
    Cout = w.shape[0]
    out = matmul_bias(x.reshape(B * N, Cin), w.T, b)
    return out.reshape(B, N, Cout)


# ------------------------------ parameters -----------------------------------

def init_block_params(key, in_ch, out_ch, K):
    keys = jax.random.split(key, 3)
    p = {}
    if in_ch != out_ch:
        p["conv_w"] = 0.1 * jax.random.normal(keys[0], (out_ch, in_ch), jnp.float32)
        p["conv_b"] = jnp.zeros((out_ch,), jnp.float32)
        p["norm_g"] = jnp.ones((out_ch,), jnp.float32)
        p["norm_b"] = jnp.zeros((out_ch,), jnp.float32)
    for name, kk in (("enc1", keys[1]), ("enc2", keys[2])):
        p[f"{name}_w"] = 0.1 * jax.random.normal(kk, (out_ch, out_ch, K), jnp.float32)
        p[f"{name}_b"] = jnp.zeros((out_ch,), jnp.float32)
        p[f"{name}_g"] = jnp.ones((out_ch,), jnp.float32)
        p[f"{name}_beta"] = jnp.zeros((out_ch,), jnp.float32)
    return p


def init_encoder_params(key, n_channels, K):
    keys = jax.random.split(key, len(n_channels) - 1)
    return [init_block_params(keys[i], n_channels[i], n_channels[i + 1], K)
            for i in range(len(n_channels) - 1)]


# ------------------------------- forward --------------------------------------

def block_forward(params, x, pts, idx):
    # x: [B, N, Cin], pts: [B, N, 3], idx: [B, N, K] (shared across the stack)
    if "conv_w" in params:                       # in_channels != out_channels
        x = conv1x1(x, params["conv_w"], params["conv_b"])
        x = instance_norm(x, params["norm_g"], params["norm_b"], relu=False)
    residual = x
    # enc1: point conv -> InstanceNorm -> ReLU
    x = point_conv(x, idx, params["enc1_w"], params["enc1_b"])
    x = instance_norm(x, params["enc1_g"], params["enc1_beta"], relu=True)
    # enc2: point conv -> InstanceNorm, fused with residual add + ReLU epilogue
    x = point_conv(x, idx, params["enc2_w"], params["enc2_b"])
    x = instance_norm_res_relu(x, residual, params["enc2_g"], params["enc2_beta"])
    return x, pts, idx


def encoder_forward(params, x_ncl, pts_nc3, K, indices=None):
    # PyTorch layout in/out: x [B, C, N], pts [B, 3, N]
    x = jnp.transpose(x_ncl, (0, 2, 1))          # -> [B, N, C]
    pts = jnp.transpose(pts_nc3, (0, 2, 1))      # -> [B, N, 3]
    # stride-1 Search over an unchanging point set is identical for enc1/enc2
    # and for every Block -> compute the kNN indices once per forward pass.
    idx = indices if indices is not None else knn_search(pts, K)
    for p in params:
        x, pts, idx = block_forward(p, x, pts, idx)
    return jnp.transpose(x, (0, 2, 1)), jnp.transpose(pts, (0, 2, 1)), idx


# --------------------------------- main ---------------------------------------

if __name__ == "__main__":
    B, N, K = 2, 64, 8
    n_channels = [4, 8, 16]

    key = jax.random.PRNGKey(0)
    kx, kp, kparam = jax.random.split(key, 3)
    x = jax.random.normal(kx, (B, n_channels[0], N), jnp.float32)   # [B, C, N]
    pts = jax.random.normal(kp, (B, 3, N), jnp.float32)             # [B, 3, N]

    params = init_encoder_params(kparam, n_channels, K)

    out_x, out_pts, out_idx = encoder_forward(params, x, pts, K)
    (out_x, out_pts, out_idx) = jax.block_until_ready((out_x, out_pts, out_idx))

    assert out_x.shape == (B, n_channels[-1], N)
    assert out_pts.shape == (B, 3, N)
    assert out_idx.shape == (B, N, K)
    assert bool(jnp.all(jnp.isfinite(out_x)))
    assert bool(jnp.all((out_idx >= 0) & (out_idx < N)))
    print("KERNEL_OK")
</pallas_src>

<mosaic_0001>
module attributes {stable_mosaic.version = 11 : i64} {
  func.func @_knn_kernel(%arg0: i32, %arg1: i32, %arg2: memref<1x64x3xf32, #tpu.memory_space<vmem>>, %arg3: memref<1x64x3xf32, #tpu.memory_space<vmem>>, %arg4: memref<1x64x8xi32, #tpu.memory_space<vmem>>) attributes {dimension_semantics = [#tpu.dimension_semantics<parallel>, #tpu.dimension_semantics<parallel>], iteration_bounds = array<i64: 2, 1>, scalar_prefetch = 0 : i64, scratch_operands = 0 : i64, tpu.core_type = #tpu.core_type<tc>, window_params = [{transform_indices = @transform_0, window_bounds = array<i64: 1, 64, 3>}, {transform_indices = @transform_1, window_bounds = array<i64: 1, 64, 3>}, {transform_indices = @transform_2, window_bounds = array<i64: 1, 64, 8>}]} {
    %c0 = arith.constant 0 : index
    %c0_0 = arith.constant 0 : index
    %c0_1 = arith.constant 0 : index
    %0 = vector.load %arg2[%c0, %c0_0, %c0_1] : memref<1x64x3xf32, #tpu.memory_space<vmem>>, vector<1x64x3xf32>
    %1 = vector.shape_cast %0 : vector<1x64x3xf32> to vector<64x3xf32>
    %c0_2 = arith.constant 0 : index
    %c0_3 = arith.constant 0 : index
    %c0_4 = arith.constant 0 : index
    %2 = vector.load %arg3[%c0_2, %c0_3, %c0_4] : memref<1x64x3xf32, #tpu.memory_space<vmem>>, vector<1x64x3xf32>
    %3 = vector.shape_cast %2 : vector<1x64x3xf32> to vector<64x3xf32>
    %4 = arith.mulf %1, %1 : vector<64x3xf32>
    %cst = arith.constant dense<0.000000e+00> : vector<64xf32>
    %5 = vector.multi_reduction <add>, %4, %cst [1] : vector<64x3xf32> to vector<64xf32>
    %6 = vector.shape_cast %5 : vector<64xf32> to vector<64x1xf32>
    %7 = arith.mulf %3, %3 : vector<64x3xf32>
    %cst_5 = arith.constant dense<0.000000e+00> : vector<64xf32>
    %8 = vector.multi_reduction <add>, %7, %cst_5 [1] : vector<64x3xf32> to vector<64xf32>
    %9 = vector.shape_cast %8 : vector<64xf32> to vector<64x1xf32>
    %cst_6 = arith.constant -2.000000e+00 : f32
    %10 = vector.broadcast %cst_6 : f32 to vector<64x3xf32>
    %11 = arith.mulf %10, %1 : vector<64x3xf32>
    %cst_7 = arith.constant 1.000000e+00 : f32
    %12 = vector.broadcast %cst_7 : f32 to vector<64x1xf32>
    %13 = tpu.concatenate %11, %6, %12 in 1 : vector<64x3xf32>, vector<64x1xf32>, vector<64x1xf32> -> vector<64x5xf32>
    %cst_8 = arith.constant 1.000000e+00 : f32
    %14 = vector.broadcast %cst_8 : f32 to vector<64x1xf32>
    %15 = tpu.concatenate %3, %14, %9 in 1 : vector<64x3xf32>, vector<64x1xf32>, vector<64x1xf32> -> vector<64x5xf32>
    %cst_9 = arith.constant dense<0.000000e+00> : vector<64x64xf32>
    %16 = tpu.matmul %13, %15, %cst_9 {dimension_numbers = #tpu.dot_dimension_numbers<[1], [1], [0], [0], [0, 0, 1, 0], [], []>} : vector<64x5xf32>, vector<64x5xf32>, vector<64x64xf32> -> vector<64x64xf32>
    %17 = tpu.iota {dimensions = array<i32: 1>} : vector<64x64xi32>
    %18 = tpu.iota {dimensions = array<i32: 1>} : vector<64x8xi32>
    %c0_i32 = arith.constant 0 : i32
    %19 = vector.broadcast %c0_i32 : i32 to vector<64x8xi32>
    %cst_10 = arith.constant dense<0x7F800000> : vector<64xf32>
    %20 = vector.multi_reduction <minimumf>, %16, %cst_10 [1] : vector<64x64xf32> to vector<64xf32>
    %21 = vector.shape_cast %20 : vector<64xf32> to vector<64x1xf32>
    %22 = vector.broadcast %21 : vector<64x1xf32> to vector<64x64xf32>
    %23 = arith.cmpf ole, %16, %22 : vector<64x64xf32>
    %c64_i32 = arith.constant 64 : i32
    %24 = vector.broadcast %c64_i32 : i32 to vector<64x64xi32>
    %25 = arith.select %23, %17, %24 : vector<64x64xi1>, vector<64x64xi32>
    %cst_11 = arith.constant dense<2147483647> : vector<64xi32>
    %26 = vector.multi_reduction <minsi>, %25, %cst_11 [1] : vector<64x64xi32> to vector<64xi32>
    %27 = vector.shape_cast %26 : vector<64xi32> to vector<64x1xi32>
    %c0_i32_12 = arith.constant 0 : i32
    %28 = vector.broadcast %c0_i32_12 : i32 to vector<64x8xi32>
    %29 = arith.cmpi eq, %18, %28 : vector<64x8xi32>
    %30 = vector.shape_cast %27 : vector<64x1xi32> to vector<64x1xi32>
    %31 = vector.broadcast %30 : vector<64x1xi32> to vector<64x8xi32>
    %32 = arith.select %29, %31, %19 : vector<64x8xi1>, vector<64x8xi32>
    %33 = vector.broadcast %27 : vector<64x1xi32> to vector<64x64xi32>
    %34 = arith.cmpi eq, %17, %33 : vector<64x64xi32>
    %cst_13 = arith.constant 0x7F800000 : f32
    %35 = vector.broadcast %cst_13 : f32 to vector<64x64xf32>
    %36 = arith.select %34, %35, %16 : vector<64x64xi1>, vector<64x64xf32>
    %cst_14 = arith.constant dense<0x7F800000> : vector<64xf32>
    %37 = vector.multi_reduction <minimumf>, %36, %cst_14 [1] : vector<64x64xf32> to vector<64xf32>
    %38 = vector.shape_cast %37 : vector<64xf32> to vector<64x1xf32>
    %39 = vector.broadcast %38 : vector<64x1xf32> to vector<64x64xf32>
    %40 = arith.cmpf ole, %36, %39 : vector<64x64xf32>
    %c64_i32_15 = arith.constant 64 : i32
    %41 = vector.broadcast %c64_i32_15 : i32 to vector<64x64xi32>
    %42 = arith.select %40, %17, %41 : vector<64x64xi1>, vector<64x64xi32>
    %cst_16 = arith.constant dense<2147483647> : vector<64xi32>
    %43 = vector.multi_reduction <minsi>, %42, %cst_16 [1] : vector<64x64xi32> to vector<64xi32>
    %44 = vector.shape_cast %43 : vector<64xi32> to vector<64x1xi32>
    %c1_i32 = arith.constant 1 : i32
    %45 = vector.broadcast %c1_i32 : i32 to vector<64x8xi32>
    %46 = arith.cmpi eq, %18, %45 : vector<64x8xi32>
    %47 = vector.shape_cast %44 : vector<64x1xi32> to vector<64x1xi32>
    %48 = vector.broadcast %47 : vector<64x1xi32> to vector<64x8xi32>
    %49 = arith.select %46, %48, %32 : vector<64x8xi1>, vector<64x8xi32>
    %50 = vector.broadcast %44 : vector<64x1xi32> to vector<64x64xi32>
    %51 = arith.cmpi eq, %17, %50 : vector<64x64xi32>
    %cst_17 = arith.constant 0x7F800000 : f32
    %52 = vector.broadcast %cst_17 : f32 to vector<64x64xf32>
    %53 = arith.select %51, %52, %36 : vector<64x64xi1>, vector<64x64xf32>
    %cst_18 = arith.constant dense<0x7F800000> : vector<64xf32>
    %54 = vector.multi_reduction <minimumf>, %53, %cst_18 [1] : vector<64x64xf32> to vector<64xf32>
    %55 = vector.shape_cast %54 : vector<64xf32> to vector<64x1xf32>
    %56 = vector.broadcast %55 : vector<64x1xf32> to vector<64x64xf32>
    %57 = arith.cmpf ole, %53, %56 : vector<64x64xf32>
    %c64_i32_19 = arith.constant 64 : i32
    %58 = vector.broadcast %c64_i32_19 : i32 to vector<64x64xi32>
    %59 = arith.select %57, %17, %58 : vector<64x64xi1>, vector<64x64xi32>
    %cst_20 = arith.constant dense<2147483647> : vector<64xi32>
    %60 = vector.multi_reduction <minsi>, %59, %cst_20 [1] : vector<64x64xi32> to vector<64xi32>
    %61 = vector.shape_cast %60 : vector<64xi32> to vector<64x1xi32>
    %c2_i32 = arith.constant 2 : i32
    %62 = vector.broadcast %c2_i32 : i32 to vector<64x8xi32>
    %63 = arith.cmpi eq, %18, %62 : vector<64x8xi32>
    %64 = vector.shape_cast %61 : vector<64x1xi32> to vector<64x1xi32>
    %65 = vector.broadcast %64 : vector<64x1xi32> to vector<64x8xi32>
    %66 = arith.select %63, %65, %49 : vector<64x8xi1>, vector<64x8xi32>
    %67 = vector.broadcast %61 : vector<64x1xi32> to vector<64x64xi32>
    %68 = arith.cmpi eq, %17, %67 : vector<64x64xi32>
    %cst_21 = arith.constant 0x7F800000 : f32
    %69 = vector.broadcast %cst_21 : f32 to vector<64x64xf32>
    %70 = arith.select %68, %69, %53 : vector<64x64xi1>, vector<64x64xf32>
    %cst_22 = arith.constant dense<0x7F800000> : vector<64xf32>
    %71 = vector.multi_reduction <minimumf>, %70, %cst_22 [1] : vector<64x64xf32> to vector<64xf32>
    %72 = vector.shape_cast %71 : vector<64xf32> to vector<64x1xf32>
    %73 = vector.broadcast %72 : vector<64x1xf32> to vector<64x64xf32>
    %74 = arith.cmpf ole, %70, %73 : vector<64x64xf32>
    %c64_i32_23 = arith.constant 64 : i32
    %75 = vector.broadcast %c64_i32_23 : i32 to vector<64x64xi32>
    %76 = arith.select %74, %17, %75 : vector<64x64xi1>, vector<64x64xi32>
    %cst_24 = arith.constant dense<2147483647> : vector<64xi32>
    %77 = vector.multi_reduction <minsi>, %76, %cst_24 [1] : vector<64x64xi32> to vector<64xi32>
    %78 = vector.shape_cast %77 : vector<64xi32> to vector<64x1xi32>
    %c3_i32 = arith.constant 3 : i32
    %79 = vector.broadcast %c3_i32 : i32 to vector<64x8xi32>
    %80 = arith.cmpi eq, %18, %79 : vector<64x8xi32>
    %81 = vector.shape_cast %78 : vector<64x1xi32> to vector<64x1xi32>
    %82 = vector.broadcast %81 : vector<64x1xi32> to vector<64x8xi32>
    %83 = arith.select %80, %82, %66 : vector<64x8xi1>, vector<64x8xi32>
    %84 = vector.broadcast %78 : vector<64x1xi32> to vector<64x64xi32>
    %85 = arith.cmpi eq, %17, %84 : vector<64x64xi32>
    %cst_25 = arith.constant 0x7F800000 : f32
    %86 = vector.broadcast %cst_25 : f32 to vector<64x64xf32>
    %87 = arith.select %85, %86, %70 : vector<64x64xi1>, vector<64x64xf32>
    %cst_26 = arith.constant dense<0x7F800000> : vector<64xf32>
    %88 = vector.multi_reduction <minimumf>, %87, %cst_26 [1] : vector<64x64xf32> to vector<64xf32>
    %89 = vector.shape_cast %88 : vector<64xf32> to vector<64x1xf32>
    %90 = vector.broadcast %89 : vector<64x1xf32> to vector<64x64xf32>
    %91 = arith.cmpf ole, %87, %90 : vector<64x64xf32>
    %c64_i32_27 = arith.constant 64 : i32
    %92 = vector.broadcast %c64_i32_27 : i32 to vector<64x64xi32>
    %93 = arith.select %91, %17, %92 : vector<64x64xi1>, vector<64x64xi32>
    %cst_28 = arith.constant dense<2147483647> : vector<64xi32>
    %94 = vector.multi_reduction <minsi>, %93, %cst_28 [1] : vector<64x64xi32> to vector<64xi32>
    %95 = vector.shape_cast %94 : vector<64xi32> to vector<64x1xi32>
    %c4_i32 = arith.constant 4 : i32
    %96 = vector.broadcast %c4_i32 : i32 to vector<64x8xi32>
    %97 = arith.cmpi eq, %18, %96 : vector<64x8xi32>
    %98 = vector.shape_cast %95 : vector<64x1xi32> to vector<64x1xi32>
    %99 = vector.broadcast %98 : vector<64x1xi32> to vector<64x8xi32>
    %100 = arith.select %97, %99, %83 : vector<64x8xi1>, vector<64x8xi32>
    %101 = vector.broadcast %95 : vector<64x1xi32> to vector<64x64xi32>
    %102 = arith.cmpi eq, %17, %101 : vector<64x64xi32>
    %cst_29 = arith.constant 0x7F800000 : f32
    %103 = vector.broadcast %cst_29 : f32 to vector<64x64xf32>
    %104 = arith.select %102, %103, %87 : vector<64x64xi1>, vector<64x64xf32>
    %cst_30 = arith.constant dense<0x7F800000> : vector<64xf32>
    %105 = vector.multi_reduction <minimumf>, %104, %cst_30 [1] : vector<64x64xf32> to vector<64xf32>
    %106 = vector.shape_cast %105 : vector<64xf32> to vector<64x1xf32>
    %107 = vector.broadcast %106 : vector<64x1xf32> to vector<64x64xf32>
    %108 = arith.cmpf ole, %104, %107 : vector<64x64xf32>
    %c64_i32_31 = arith.constant 64 : i32
    %109 = vector.broadcast %c64_i32_31 : i32 to vector<64x64xi32>
    %110 = arith.select %108, %17, %109 : vector<64x64xi1>, vector<64x64xi32>
    %cst_32 = arith.constant dense<2147483647> : vector<64xi32>
    %111 = vector.multi_reduction <minsi>, %110, %cst_32 [1] : vector<64x64xi32> to vector<64xi32>
    %112 = vector.shape_cast %111 : vector<64xi32> to vector<64x1xi32>
    %c5_i32 = arith.constant 5 : i32
    %113 = vector.broadcast %c5_i32 : i32 to vector<64x8xi32>
    %114 = arith.cmpi eq, %18, %113 : vector<64x8xi32>
    %115 = vector.shape_cast %112 : vector<64x1xi32> to vector<64x1xi32>
    %116 = vector.broadcast %115 : vector<64x1xi32> to vector<64x8xi32>
    %117 = arith.select %114, %116, %100 : vector<64x8xi1>, vector<64x8xi32>
    %118 = vector.broadcast %112 : vector<64x1xi32> to vector<64x64xi32>
    %119 = arith.cmpi eq, %17, %118 : vector<64x64xi32>
    %cst_33 = arith.constant 0x7F800000 : f32
    %120 = vector.broadcast %cst_33 : f32 to vector<64x64xf32>
    %121 = arith.select %119, %120, %104 : vector<64x64xi1>, vector<64x64xf32>
    %cst_34 = arith.constant dense<0x7F800000> : vector<64xf32>
    %122 = vector.multi_reduction <minimumf>, %121, %cst_34 [1] : vector<64x64xf32> to vector<64xf32>
    %123 = vector.shape_cast %122 : vector<64xf32> to vector<64x1xf32>
    %124 = vector.broadcast %123 : vector<64x1xf32> to vector<64x64xf32>
    %125 = arith.cmpf ole, %121, %124 : vector<64x64xf32>
    %c64_i32_35 = arith.constant 64 : i32
    %126 = vector.broadcast %c64_i32_35 : i32 to vector<64x64xi32>
    %127 = arith.select %125, %17, %126 : vector<64x64xi1>, vector<64x64xi32>
    %cst_36 = arith.constant dense<2147483647> : vector<64xi32>
    %128 = vector.multi_reduction <minsi>, %127, %cst_36 [1] : vector<64x64xi32> to vector<64xi32>
    %129 = vector.shape_cast %128 : vector<64xi32> to vector<64x1xi32>
    %c6_i32 = arith.constant 6 : i32
    %130 = vector.broadcast %c6_i32 : i32 to vector<64x8xi32>
    %131 = arith.cmpi eq, %18, %130 : vector<64x8xi32>
    %132 = vector.shape_cast %129 : vector<64x1xi32> to vector<64x1xi32>
    %133 = vector.broadcast %132 : vector<64x1xi32> to vector<64x8xi32>
    %134 = arith.select %131, %133, %117 : vector<64x8xi1>, vector<64x8xi32>
    %135 = vector.broadcast %129 : vector<64x1xi32> to vector<64x64xi32>
    %136 = arith.cmpi eq, %17, %135 : vector<64x64xi32>
    %cst_37 = arith.constant 0x7F800000 : f32
    %137 = vector.broadcast %cst_37 : f32 to vector<64x64xf32>
    %138 = arith.select %136, %137, %121 : vector<64x64xi1>, vector<64x64xf32>
    %cst_38 = arith.constant dense<0x7F800000> : vector<64xf32>
    %139 = vector.multi_reduction <minimumf>, %138, %cst_38 [1] : vector<64x64xf32> to vector<64xf32>
    %140 = vector.shape_cast %139 : vector<64xf32> to vector<64x1xf32>
    %141 = vector.broadcast %140 : vector<64x1xf32> to vector<64x64xf32>
    %142 = arith.cmpf ole, %138, %141 : vector<64x64xf32>
    %c64_i32_39 = arith.constant 64 : i32
    %143 = vector.broadcast %c64_i32_39 : i32 to vector<64x64xi32>
    %144 = arith.select %142, %17, %143 : vector<64x64xi1>, vector<64x64xi32>
    %cst_40 = arith.constant dense<2147483647> : vector<64xi32>
    %145 = vector.multi_reduction <minsi>, %144, %cst_40 [1] : vector<64x64xi32> to vector<64xi32>
    %146 = vector.shape_cast %145 : vector<64xi32> to vector<64x1xi32>
    %c7_i32 = arith.constant 7 : i32
    %147 = vector.broadcast %c7_i32 : i32 to vector<64x8xi32>
    %148 = arith.cmpi eq, %18, %147 : vector<64x8xi32>
    %149 = vector.shape_cast %146 : vector<64x1xi32> to vector<64x1xi32>
    %150 = vector.broadcast %149 : vector<64x1xi32> to vector<64x8xi32>
    %151 = arith.select %148, %150, %134 : vector<64x8xi1>, vector<64x8xi32>
    %c0_41 = arith.constant 0 : index
    %c0_42 = arith.constant 0 : index
    %c0_43 = arith.constant 0 : index
    %152 = vector.load %arg4[%c0_41, %c0_42, %c0_43] : memref<1x64x8xi32, #tpu.memory_space<vmem>>, vector<1x64x8xi32>
    %153 = vector.shape_cast %152 : vector<1x64x8xi32> to vector<64x8xi32>
    %154 = vector.shape_cast %151 : vector<64x8xi32> to vector<1x64x8xi32>
    tpu.vector_store %arg4[%c0_41, %c0_42, %c0_43], %154 {strides = array<i32>} : memref<1x64x8xi32, #tpu.memory_space<vmem>>, vector<1x64x8xi32>,
    return
  }
  func.func @transform_0(%arg0: i32, %arg1: i32) -> (i32, i32, i32) {
    %c0_i32 = arith.constant 0 : i32
    %c0_i32_0 = arith.constant 0 : i32
    return %arg0, %arg1, %c0_i32 : i32, i32, i32
  }
  func.func @transform_1(%arg0: i32, %arg1: i32) -> (i32, i32, i32) {
    %c0_i32 = arith.constant 0 : i32
    %c0_i32_0 = arith.constant 0 : i32
    %c0_i32_1 = arith.constant 0 : i32
    return %arg0, %c0_i32, %c0_i32_0 : i32, i32, i32
  }
  func.func @transform_2(%arg0: i32, %arg1: i32) -> (i32, i32, i32) {
    %c0_i32 = arith.constant 0 : i32
    %c0_i32_0 = arith.constant 0 : i32
    return %arg0, %arg1, %c0_i32 : i32, i32, i32
  }
}

</mosaic_0001>

<llo_original>
// kernel: tpu_custom_call.1
$region0: #{tpu_custom_call.1}
  #allocation0 [shape = 'u32[]', space=smem, size = 0x4, offset = 0x4, fixed_abs, tag = 'smem constant byte address 0x4 - core index']
  #allocation1 [shape = 'u32[144,128]{1,0:T(1,128)}', space=vmem, size = 0x12000, scoped, tag = 'internal scratch']
  %s0 = inlined_call_operand.vmem [shape: f32[2,64,3], index: 0, kind: input, shape index: {}]
  %s1 = inlined_call_operand.vmem [shape: f32[2,64,3], index: 1, kind: input, shape index: {}]
  %s2 = inlined_call_operand.vmem [shape: s32[2,64,8], index: 2, kind: output, shape index: {}]
  %s3 = sld [smem:[#allocation0]]
  $region41: #{tpu_custom_call.1} parent=0
    _
  %s5 = ssub.s32 1, %s3
  %s6 = scalar_select 0, %s5, %s3
  loop: start=0, step=1, limit=4
  $region2: #{tpu_custom_call.1} parent=0 // loop_pre_header
    _
  $region3: #{tpu_custom_call.1} parent=0 // loop_header
    %s8 = sphi 0, %s12
    %p9 = scmp.ge.s32.totalorder %s8, 4
    %s15 = sphi 0, %s27
    %s16 = sphi 0, %s23
    %s17 = sphi 0, %s15
    %s18 = sphi 0, %s16
    %s19 = sphi 0, %s17
    %s20 = sphi 0, %s18
    %s32 = sphi 0, %s34
    %s35 = sphi 0, %s32
    %s36 = sphi 0, %s35
    %s52 = sphi 0, %s36
    %s58 = sphi 0, %s60
    %s61 = sphi 0, %s58
    %s62 = sphi 0, %s61
    %s78 = sphi 0, %s62
    %s86 = sphi 0, %s88
    %s89 = sphi 0, %s86
    %s90 = sphi 0, %s89
    %s106 = sphi 0, %s90
  $region4: #{tpu_custom_call.1} parent=0 // loop_header_branch
    %11 = sbr.rel (%p9) target = $region8
  $region5: #{tpu_custom_call.1} parent=0 // loop_body
    %s13 = ssub.s32 %s8, 1
    %s14 = ssub.s32 %s8, 2
    %s21 = sadd.s32 1, %s16
    %p22 = scmp.ge.s32.totalorder %s21, 1
    %s23 = scalar_select %p22, 0, %s21
    %s24 = sadd.s32 1, %s15
    %s25 = scalar_select %p22, %s24, %s15
    %p26 = scmp.ge.s32.totalorder %s25, 2
    %s27 = scalar_select %p26, 0, %s25
    %s28 = ssub.s32 %s15, %s27
    %s29 = ssub.s32 %s16, %s23
    %s30 = sor.u32 %s28, %s29
    %p31 = scmp.eq.s32.totalorder %s30, 0
    %s33 = sadd.s32 %s32, 1
    %s34 = scalar_select %p31, %s32, %s33
    %p37 = pneg %p31
    %p38 = scmp.eq.s32.totalorder %s8, 1
    %p39 = por %p37, %p38
    %p40 = scmp.ne.s32.totalorder %s32, %s35
    %p41 = scmp.eq.s32.totalorder %s8, 0
    %p42 = por %p40, %p41
    %p43 = scmp.ne.s32.totalorder %s32, %s35
    %p44 = scmp.eq.s32.totalorder %s13, 1
    %p45 = por %p43, %p44
    %p46 = scmp.ne.s32.totalorder %s35, %s36
    %p47 = scmp.eq.s32.totalorder %s13, 0
    %p48 = por %p46, %p47
    %p49 = scmp.ne.s32.totalorder %s35, %s36
    %p50 = scmp.eq.s32.totalorder %s14, 1
    %p51 = por %p49, %p50
    %p53 = scmp.ne.s32.totalorder %s36, %s52
    %p54 = scmp.eq.s32.totalorder %s14, 0
    %p55 = por %p53, %p54
    %s56 = ssub.s32 %s15, %s27
    %p57 = scmp.eq.s32.totalorder %s56, 0
    %s59 = sadd.s32 %s58, 1
    %s60 = scalar_select %p57, %s58, %s59
    %p63 = pneg %p57
    %p64 = scmp.eq.s32.totalorder %s8, 1
    %p65 = por %p63, %p64
    %p66 = scmp.ne.s32.totalorder %s58, %s61
    %p67 = scmp.eq.s32.totalorder %s8, 0
    %p68 = por %p66, %p67
    %p69 = scmp.ne.s32.totalorder %s58, %s61
    %p70 = scmp.eq.s32.totalorder %s13, 1
    %p71 = por %p69, %p70
    %p72 = scmp.ne.s32.totalorder %s61, %s62
    %p73 = scmp.eq.s32.totalorder %s13, 0
    %p74 = por %p72, %p73
    %p75 = scmp.ne.s32.totalorder %s61, %s62
    %p76 = scmp.eq.s32.totalorder %s14, 1
    %p77 = por %p75, %p76
    %p79 = scmp.ne.s32.totalorder %s62, %s78
    %p80 = scmp.eq.s32.totalorder %s14, 0
    %p81 = por %p79, %p80
    %s82 = ssub.s32 %s15, %s27
    %s83 = ssub.s32 %s16, %s23
    %s84 = sor.u32 %s82, %s83
    %p85 = scmp.eq.s32.totalorder %s84, 0
    %s87 = sadd.s32 %s86, 1
    %s88 = scalar_select %p85, %s86, %s87
    %p91 = pneg %p85
    %p92 = scmp.eq.s32.totalorder %s8, 1
    %p93 = por %p91, %p92
    %p94 = scmp.ne.s32.totalorder %s86, %s89
    %p95 = scmp.eq.s32.totalorder %s8, 0
    %p96 = por %p94, %p95
    %p97 = scmp.ne.s32.totalorder %s86, %s89
    %p98 = scmp.eq.s32.totalorder %s13, 1
    %p99 = por %p97, %p98
    %p100 = scmp.ne.s32.totalorder %s89, %s90
    %p101 = scmp.eq.s32.totalorder %s13, 0
    %p102 = por %p100, %p101
    %p103 = scmp.ne.s32.totalorder %s89, %s90
    %p104 = scmp.eq.s32.totalorder %s14, 1
    %p105 = por %p103, %p104
    %p107 = scmp.ne.s32.totalorder %s90, %s106
    %p108 = scmp.eq.s32.totalorder %s14, 0
    %p109 = por %p107, %p108
    %p110 = scmp.le.s32.totalorder 1, %s8
    %p111 = scmp.lt.s32.totalorder %s8, 3
    %p112 = pnand %p110, %p111
    %p113 = pneg %p112
    // Predicated region
    $region9: #{tpu_custom_call.1} parent=5 // pred_check
      _
    $region10: #{tpu_custom_call.1} parent=5 // pred_check_branch
      %115 = sbr.rel (%p112) target = $region12
    $region11: #{tpu_custom_call.1} parent=5 // pred_region
      %s116 = ssub.s32 %s8, 1
    $region12: #{tpu_custom_call.1} parent=5 // pred_fallthru
      _
    %p117 = scmp.lt.s32.totalorder %s8, 2
    // Predicated region
    $region13: #{tpu_custom_call.1} parent=5 // pred_check
      %p118 = pneg %p117
    $region14: #{tpu_custom_call.1} parent=5 // pred_check_branch
      %120 = sbr.rel (%p118) target = $region16
    $region15: #{tpu_custom_call.1} parent=5 // pred_region
      // Predicated region
      $region17: #{tpu_custom_call.1} parent=15 // pred_check
        %p121 = pneg %p42
      $region18: #{tpu_custom_call.1} parent=15 // pred_check_branch
        %123 = sbr.rel (%p121) target = $region20
      $region19: #{tpu_custom_call.1} parent=15 // pred_region
        %s124 = smul.u32 8, %s16
        %p125 = scmp.lt.s32.totalorder %s15, 1
        %s126 = scalar_select %p125, %s15, 1
        %p127 = scmp.lt.s32.totalorder %s124, 7
        %s128 = scalar_select %p127, %s124, 7
        %s129 = smul.addr %s126, 8
        %s130 = sadd.s32 %s128, %s129
        %s131 = smul.addr %s130, 8
        %s132 = scalar_lea.vmem %s0, %s131
        %s133 = smul.u32 8, %s16
      $region20: #{tpu_custom_call.1} parent=15 // pred_fallthru
        _
      // Predicated region
      $region21: #{tpu_custom_call.1} parent=15 // pred_check
        %p134 = pneg %p68
      $region22: #{tpu_custom_call.1} parent=15 // pred_check_branch
        %136 = sbr.rel (%p134) target = $region24
      $region23: #{tpu_custom_call.1} parent=15 // pred_region
        %p137 = scmp.lt.s32.totalorder %s15, 1
        %s138 = scalar_select %p137, %s15, 1
        %s139 = smul.addr %s138, 8
        %s140 = smul.addr %s139, 8
        %s141 = scalar_lea.vmem %s1, %s140
      $region24: #{tpu_custom_call.1} parent=15 // pred_fallthru
        _
    $region16: #{tpu_custom_call.1} parent=5 // pred_fallthru
      _
    %p142 = scmp.le.s32.totalorder 1, %s8
    %p143 = scmp.lt.s32.totalorder %s8, 3
    %p144 = pnand %p142, %p143
    %p145 = pneg %p144
    // Predicated region
    $region25: #{tpu_custom_call.1} parent=5 // pred_check
      _
    $region26: #{tpu_custom_call.1} parent=5 // pred_check_branch
      %147 = sbr.rel (%p144) target = $region28
    $region27: #{tpu_custom_call.1} parent=5 // pred_region
      %s148 = ssub.s32 %s8, 1
      %s149 = smul.u32 8, %s18
      %p150 = scmp.lt.s32.totalorder %s17, 1
      %s151 = scalar_select %p150, %s17, 1
      %p152 = scmp.lt.s32.totalorder %s149, 7
      %s153 = scalar_select %p152, %s149, 7
      %s154 = smul.addr %s151, 8
      %s155 = sadd.s32 %s153, %s154
      %s156 = smul.addr %s155, 8
      %s157 = scalar_lea.vmem %s0, %s156
      %p158 = pneg %p48
      %p159 = pneg %p45
      %p160 = scmp.lt.s32.totalorder %s17, 1
      %s161 = scalar_select %p160, %s17, 1
      %s162 = smul.addr %s161, 8
      %s163 = smul.addr %s162, 8
      %s164 = scalar_lea.vmem %s1, %s163
      %p165 = pneg %p74
      %p166 = pneg %p71
      %p167 = pneg %p102
      %p168 = pneg %p99
      %s169 = smul.u32 8, %s18
      %p170 = scmp.lt.s32.totalorder %s17, 1
      %s171 = scalar_select %p170, %s17, 1
      %p172 = scmp.lt.s32.totalorder %s169, 7
      %s173 = scalar_select %p172, %s169, 7
      %s174 = smul.addr %s171, 8
      %s175 = sadd.s32 %s173, %s174
      %s176 = smul.addr %s175, 8
      %s177 = scalar_lea.vmem %s2, %s176
      %s178 = smul.u32 8, %s18
      %p179 = scmp.lt.s32.totalorder %s17, 1
      %s180 = scalar_select %p179, %s17, 1
      %p181 = scmp.lt.s32.totalorder %s178, 7
      %s182 = scalar_select %p181, %s178, 7
      %s183 = smul.addr %s180, 8
      %s184 = sadd.s32 %s182, %s183
      %s185 = smul.addr %s184, 8
      %s186 = scalar_lea.vmem %s0, %s185
      %s187 = smul.u32 8, %s18
      %p188 = scmp.lt.s32.totalorder %s17, 1
      %s189 = scalar_select %p188, %s17, 1
      %s190 = smul.addr %s189, 8
      %s191 = smul.addr %s190, 8
      %s192 = scalar_lea.vmem %s1, %s191
      %s193 = smul.u32 8, %s18
      %p194 = scmp.lt.s32.totalorder %s17, 1
      %s195 = scalar_select %p194, %s17, 1
      %p196 = scmp.lt.s32.totalorder %s193, 7
      %s197 = scalar_select %p196, %s193, 7
      %s198 = smul.addr %s195, 8
      %s199 = sadd.s32 %s197, %s198
      %s200 = smul.addr %s199, 8
      %s201 = scalar_lea.vmem %s2, %s200
      %s202 = smul.u32 8, %s18
      %v203 = vld [vmem:[%s186] sm:$0xff]
      %v204 = vld [vmem:[%s186 + $0x8] sm:$0xff]
      %v205 = vld [vmem:[%s186 + $0x10] sm:$0xff]
      %v206 = vld [vmem:[%s186 + $0x18] sm:$0xff]
      %v207 = vld [vmem:[%s186 + $0x20] sm:$0xff]
      %v208 = vld [vmem:[%s186 + $0x28] sm:$0xff]
      %v209 = vld [vmem:[%s186 + $0x30] sm:$0xff]
      %v210 = vld [vmem:[%s186 + $0x38] sm:$0xff]
      %v211 = vld [vmem:[%s192] sm:$0xff]
      %v212 = vld [vmem:[%s192 + $0x8] sm:$0xff]
      %v213 = vld [vmem:[%s192 + $0x10] sm:$0xff]
      %v214 = vld [vmem:[%s192 + $0x18] sm:$0xff]
      %v215 = vld [vmem:[%s192 + $0x20] sm:$0xff]
      %v216 = vld [vmem:[%s192 + $0x28] sm:$0xff]
      %v217 = vld [vmem:[%s192 + $0x30] sm:$0xff]
      %v218 = vld [vmem:[%s192 + $0x38] sm:$0xff]
      %v219 = vmul.f32 %v203, %v203
      %v220 = vmul.f32 %v204, %v204
      %v221 = vmul.f32 %v205, %v205
      %v222 = vmul.f32 %v206, %v206
      %v223 = vmul.f32 %v207, %v207
      %v224 = vmul.f32 %v208, %v208
      %v225 = vmul.f32 %v209, %v209
      %v226 = vmul.f32 %v210, %v210
      %vm227 = vcmask 23552
      %v228 = vsel %vm227, %v219, 0.0
      %229 = vadd.xlane.f32.xlu0 %v228
      %v230 = vpop.xlane.xlu0 %229
      %v231 = vsel %vm227, %v220, 0.0
      %232 = vadd.xlane.f32.xlu0 %v231
      %v233 = vpop.xlane.xlu0 %232
      %v234 = vsel %vm227, %v221, 0.0
      %235 = vadd.xlane.f32.xlu0 %v234
      %v236 = vpop.xlane.xlu0 %235
      %v237 = vsel %vm227, %v222, 0.0
      %238 = vadd.xlane.f32.xlu0 %v237
      %v239 = vpop.xlane.xlu0 %238
      %v240 = vsel %vm227, %v223, 0.0
      %241 = vadd.xlane.f32.xlu0 %v240
      %v242 = vpop.xlane.xlu0 %241
      %v243 = vsel %vm227, %v224, 0.0
      %244 = vadd.xlane.f32.xlu0 %v243
      %v245 = vpop.xlane.xlu0 %244
      %v246 = vsel %vm227, %v225, 0.0
      %247 = vadd.xlane.f32.xlu0 %v246
      %v248 = vpop.xlane.xlu0 %247
      %v249 = vsel %vm227, %v226, 0.0
      %250 = vadd.xlane.f32.xlu0 %v249
      %v251 = vpop.xlane.xlu0 %250
      %v252 = vmul.f32 %v211, %v211
      %v253 = vmul.f32 %v212, %v212
      %v254 = vmul.f32 %v213, %v213
      %v255 = vmul.f32 %v214, %v214
      %v256 = vmul.f32 %v215, %v215
      %v257 = vmul.f32 %v216, %v216
      %v258 = vmul.f32 %v217, %v217
      %v259 = vmul.f32 %v218, %v218
      %v260 = vsel %vm227, %v252, 0.0
      %261 = vadd.xlane.f32.xlu0 %v260
      %v262 = vpop.xlane.xlu0 %261
      %v263 = vsel %vm227, %v253, 0.0
      %264 = vadd.xlane.f32.xlu0 %v263
      %v265 = vpop.xlane.xlu0 %264
      %v266 = vsel %vm227, %v254, 0.0
      %267 = vadd.xlane.f32.xlu0 %v266
      %v268 = vpop.xlane.xlu0 %267
      %v269 = vsel %vm227, %v255, 0.0
      %270 = vadd.xlane.f32.xlu0 %v269
      %v271 = vpop.xlane.xlu0 %270
      %v272 = vsel %vm227, %v256, 0.0
      %273 = vadd.xlane.f32.xlu0 %v272
      %v274 = vpop.xlane.xlu0 %273
      %v275 = vsel %vm227, %v257, 0.0
      %276 = vadd.xlane.f32.xlu0 %v275
      %v277 = vpop.xlane.xlu0 %276
      %v278 = vsel %vm227, %v258, 0.0
      %279 = vadd.xlane.f32.xlu0 %v278
      %v280 = vpop.xlane.xlu0 %279
      %v281 = vsel %vm227, %v259, 0.0
      %282 = vadd.xlane.f32.xlu0 %v281
      %v283 = vpop.xlane.xlu0 %282
      %v284 = vmul.f32 %v203, -2.0
      %v285 = vmul.f32 %v204, -2.0
      %v286 = vmul.f32 %v205, -2.0
      %v287 = vmul.f32 %v206, -2.0
      %v288 = vmul.f32 %v207, -2.0
      %v289 = vmul.f32 %v208, -2.0
      %v290 = vmul.f32 %v209, -2.0
      %v291 = vmul.f32 %v210, -2.0
      %v292 = vsel %vm227, %v284, %v230
      %v293 = vsel %vm227, %v285, %v233
      %v294 = vsel %vm227, %v286, %v236
      %v295 = vsel %vm227, %v287, %v239
      %v296 = vsel %vm227, %v288, %v242
      %v297 = vsel %vm227, %v289, %v245
      %v298 = vsel %vm227, %v290, %v248
      %v299 = vsel %vm227, %v291, %v251
      %vm300 = vcmask 31744
      %v301 = vsel %vm300, %v292, 1.0
      %v302 = vsel %vm300, %v293, 1.0
      %v303 = vsel %vm300, %v294, 1.0
      %v304 = vsel %vm300, %v295, 1.0
      %v305 = vsel %vm300, %v296, 1.0
      %v306 = vsel %vm300, %v297, 1.0
      %v307 = vsel %vm300, %v298, 1.0
      %v308 = vsel %vm300, %v299, 1.0
      %v309 = vsel %vm227, %v211, 1.0
      %v310 = vsel %vm227, %v212, 1.0
      %v311 = vsel %vm227, %v213, 1.0
      %v312 = vsel %vm227, %v214, 1.0
      %v313 = vsel %vm227, %v215, 1.0
      %v314 = vsel %vm227, %v216, 1.0
      %v315 = vsel %vm227, %v217, 1.0
      %v316 = vsel %vm227, %v218, 1.0
      %v317 = vsel %vm300, %v309, %v262
      %v318 = vsel %vm300, %v310, %v265
      %v319 = vsel %vm300, %v311, %v268
      %v320 = vsel %vm300, %v312, %v271
      %v321 = vsel %vm300, %v313, %v274
      %v322 = vsel %vm300, %v314, %v277
      %v323 = vsel %vm300, %v315, %v280
      %v324 = vsel %vm300, %v316, %v283
      %vm325 = vcmask 39936
      %v327 = vsel %vm325, %v301, 0
      %v330 = vsel %vm325, %v302, 0
      %v333 = vsel %vm325, %v303, 0
      %v336 = vsel %vm325, %v304, 0
      %v339 = vsel %vm325, %v305, 0
      %v342 = vsel %vm325, %v306, 0
      %v345 = vsel %vm325, %v307, 0
      %v348 = vsel %vm325, %v308, 0
      %v351 = vsel %vm325, %v317, 0
      %v354 = vsel %vm325, %v318, 0
      %v357 = vsel %vm325, %v319, 0
      %v360 = vsel %vm325, %v320, 0
      %v363 = vsel %vm325, %v321, 0
      %v366 = vsel %vm325, %v322, 0
      %v369 = vsel %vm325, %v323, 0
      %v372 = vsel %vm325, %v324, 0
      %374 = vmatprep.subr.mxu0 0.0
      %375 = vmatpush1.xpose.msra.mxu0 %v351
      %376 = vmatprep.subr.mxu0 0.0
      %377 = vmatpush1.xpose.msra.mxu0 %v354
      %378 = vmatprep.subr.mxu0 0.0
      %379 = vmatpush1.xpose.msra.mxu0 %v357
      %380 = vmatprep.subr.mxu0 0.0
      %381 = vmatpush1.xpose.msra.mxu0 %v360
      %382 = vmatprep.subr.mxu0 0.0
      %383 = vmatpush1.xpose.msra.mxu0 %v363
      %384 = vmatprep.subr.mxu0 0.0
      %385 = vmatpush1.xpose.msra.mxu0 %v366
      %386 = vmatprep.subr.mxu0 0.0
      %387 = vmatpush1.xpose.msra.mxu0 %v369
      %388 = vmatprep.subr.mxu0 0.0
      %389 = vmatpush1.xpose.msra.mxu0 %v372
      %390 = vmatprep.subr.mxu0 0.0
      %391 = vmatpush1.xpose.msra.mxu0 0.0
      %392 = vmatprep.subr.mxu0 0.0
      %393 = vmatpush1.xpose.msra.mxu0 0.0
      %394 = vmatprep.subr.mxu0 0.0
      %395 = vmatpush1.xpose.msra.mxu0 0.0
      %396 = vmatprep.subr.mxu0 0.0
      %397 = vmatpush1.xpose.msra.mxu0 0.0
      %398 = vmatprep.subr.mxu0 0.0
      %399 = vmatpush1.xpose.msra.mxu0 0.0
      %400 = vmatprep.subr.mxu0 0.0
      %401 = vmatpush1.xpose.msra.mxu0 0.0
      %402 = vmatprep.subr.mxu0 0.0
      %403 = vmatpush1.xpose.msra.mxu0 0.0
      %404 = vmatprep.subr.mxu0 0.0
      %405 = vmatpush1.xpose.msra.mxu0 0.0
      %406 = vmatprep.subr.mxu0 0.0
      %407 = vmatpush1.xpose.msra.mxu0 0.0
      %408 = vmatprep.subr.mxu0 0.0
      %409 = vmatpush1.xpose.msra.mxu0 0.0
      %410 = vmatprep.subr.mxu0 0.0
      %411 = vmatpush1.xpose.msra.mxu0 0.0
      %412 = vmatprep.subr.mxu0 0.0
      %413 = vmatpush1.xpose.msra.mxu0 0.0
      %414 = vmatprep.subr.mxu0 0.0
      %415 = vmatpush1.xpose.msra.mxu0 0.0
      %416 = vmatprep.subr.mxu0 0.0
      %417 = vmatpush1.xpose.msra.mxu0 0.0
      %418 = vmatprep.subr.mxu0 0.0
      %419 = vmatpush1.xpose.msra.mxu0 0.0
      %420 = vmatprep.subr.mxu0 0.0
      %421 = vmatpush1.xpose.msra.mxu0 0.0
      %422 = vmatprep.subr.mxu0 0.0
      %423 = vmatpush1.xpose.msra.mxu0 0.0
      %424 = vmatprep.subr.mxu0 0.0
      %425 = vmatpush1.xpose.msra.mxu0 0.0
      %426 = vmatprep.subr.mxu0 0.0
      %427 = vmatpush1.xpose.msra.mxu0 0.0
      %428 = vmatprep.subr.mxu0 0.0
      %429 = vmatpush1.xpose.msra.mxu0 0.0
      %430 = vmatprep.subr.mxu0 0.0
      %431 = vmatpush1.xpose.msra.mxu0 0.0
      %432 = vmatprep.subr.mxu0 0.0
      %433 = vmatpush1.xpose.msra.mxu0 0.0
      %434 = vmatprep.subr.mxu0 0.0
      %435 = vmatpush1.xpose.msra.mxu0 0.0
      %436 = vmatprep.subr.mxu0 0.0
      %437 = vmatpush1.xpose.msra.mxu0 0.0
      %438 = vmatprep.mubr.f32.mxu0 0.0
      %439 = vmatmul.mubr.f32.gmra.mrb[0].mxu0 %v327
      %v440 = vpop.f32.mrb[0].mxu0
      %v441 = vadd.f32 0.0, %v440
      %v442 = vpop.f32.mrb[0].mxu0
      %443 = vmatprep.mubr.f32.mxu0 0.0
      %444 = vmatmul.mubr.f32.gmra.mrb[0].mxu0 %v330
      %v445 = vpop.f32.mrb[0].mxu0
      %v446 = vadd.f32 0.0, %v445
      %v447 = vpop.f32.mrb[0].mxu0
      %448 = vmatprep.mubr.f32.mxu0 0.0
      %449 = vmatmul.mubr.f32.gmra.mrb[0].mxu0 %v333
      %v450 = vpop.f32.mrb[0].mxu0
      %v451 = vadd.f32 0.0, %v450
      %v452 = vpop.f32.mrb[0].mxu0
      %453 = vmatprep.mubr.f32.mxu0 0.0
      %454 = vmatmul.mubr.f32.gmra.mrb[0].mxu0 %v336
      %v455 = vpop.f32.mrb[0].mxu0
      %v456 = vadd.f32 0.0, %v455
      %v457 = vpop.f32.mrb[0].mxu0
      %458 = vmatprep.mubr.f32.mxu0 0.0
      %459 = vmatmul.mubr.f32.gmra.mrb[0].mxu0 %v339
      %v460 = vpop.f32.mrb[0].mxu0
      %v461 = vadd.f32 0.0, %v460
      %v462 = vpop.f32.mrb[0].mxu0
      %463 = vmatprep.mubr.f32.mxu0 0.0
      %464 = vmatmul.mubr.f32.gmra.mrb[0].mxu0 %v342
      %v465 = vpop.f32.mrb[0].mxu0
      %v466 = vadd.f32 0.0, %v465
      %v467 = vpop.f32.mrb[0].mxu0
      %468 = vmatprep.mubr.f32.mxu0 0.0
      %469 = vmatmul.mubr.f32.gmra.mrb[0].mxu0 %v345
      %v470 = vpop.f32.mrb[0].mxu0
      %v471 = vadd.f32 0.0, %v470
      %v472 = vpop.f32.mrb[0].mxu0
      %473 = vmatprep.mubr.f32.mxu0 0.0
      %474 = vmatmul.mubr.f32.gmra.mrb[0].mxu0 %v348
      %v475 = vpop.f32.mrb[0].mxu0
      %v476 = vadd.f32 0.0, %v475
      %v477 = vpop.f32.mrb[0].mxu0
      %478 = vdwg.mxu0
      %v479 = vlaneseq
      %v480 = vand.u32 %v479, 127
      %vm481 = vcmask 523264
      %v482 = vsel %vm481, %v441, inf
      %483 = vmin.xlane.f32.xlu0 %v482
      %v484 = vpop.xlane.xlu0 %483
      %v485 = vsel %vm481, %v446, inf
      %486 = vmin.xlane.f32.xlu0 %v485
      %v487 = vpop.xlane.xlu0 %486
      %v488 = vsel %vm481, %v451, inf
      %489 = vmin.xlane.f32.xlu0 %v488
      %v490 = vpop.xlane.xlu0 %489
      %v491 = vsel %vm481, %v456, inf
      %492 = vmin.xlane.f32.xlu0 %v491
      %v493 = vpop.xlane.xlu0 %492
      %v494 = vsel %vm481, %v461, inf
      %495 = vmin.xlane.f32.xlu0 %v494
      %v496 = vpop.xlane.xlu0 %495
      %v497 = vsel %vm481, %v466, inf
      %498 = vmin.xlane.f32.xlu0 %v497
      %v499 = vpop.xlane.xlu0 %498
      %v500 = vsel %vm481, %v471, inf
      %501 = vmin.xlane.f32.xlu0 %v500
      %v502 = vpop.xlane.xlu0 %501
      %v503 = vsel %vm481, %v476, inf
      %504 = vmin.xlane.f32.xlu0 %v503
      %v505 = vpop.xlane.xlu0 %504
      %vm506 = vcmp.le.f32.partialorder %v441, %v484
      %vm507 = vcmp.le.f32.partialorder %v446, %v487
      %vm508 = vcmp.le.f32.partialorder %v451, %v490
      %vm509 = vcmp.le.f32.partialorder %v456, %v493
      %vm510 = vcmp.le.f32.partialorder %v461, %v496
      %vm511 = vcmp.le.f32.partialorder %v466, %v499
      %vm512 = vcmp.le.f32.partialorder %v471, %v502
      %vm513 = vcmp.le.f32.partialorder %v476, %v505
      %v514 = vsel %vm506, %v480, 64
      %v515 = vsel %vm507, %v480, 64
      %v516 = vsel %vm508, %v480, 64
      %v517 = vsel %vm509, %v480, 64
      %v518 = vsel %vm510, %v480, 64
      %v519 = vsel %vm511, %v480, 64
      %v520 = vsel %vm512, %v480, 64
      %v521 = vsel %vm513, %v480, 64
      %v522 = vsel %vm481, %v514, 2147483647
      %v523 = vand.u32 %v522, 65535
      %v524 = vshra.s32 %v522, 16
      %v525 = vcvt.s32.f32 %v523
      %v526 = vcvt.s32.f32 %v524
      %527 = vmin.xlane.f32.xlu0 %v526
      %v528 = vpop.xlane.xlu0 %527
      %vm529 = vcmp.eq.f32.partialorder %v526, %v528
      %v530 = vsel %vm529, %v525, inf
      %531 = vmin.xlane.f32.xlu0 %v530
      %v532 = vpop.xlane.xlu0 %531
      %v533 = vcvt.f32.s32 %v532
      %v534 = vcvt.f32.s32 %v528
      %v535 = vshll.u32 %v534, 16
      %v536 = vadd.s32 %v535, %v533
      %v537 = vsel %vm481, %v515, 2147483647
      %v538 = vand.u32 %v537, 65535
      %v539 = vshra.s32 %v537, 16
      %v540 = vcvt.s32.f32 %v538
      %v541 = vcvt.s32.f32 %v539
      %542 = vmin.xlane.f32.xlu0 %v541
      %v543 = vpop.xlane.xlu0 %542
      %vm544 = vcmp.eq.f32.partialorder %v541, %v543
      %v545 = vsel %vm544, %v540, inf
      %546 = vmin.xlane.f32.xlu0 %v545
      %v547 = vpop.xlane.xlu0 %546
      %v548 = vcvt.f32.s32 %v547
      %v549 = vcvt.f32.s32 %v543
      %v550 = vshll.u32 %v549, 16
      %v551 = vadd.s32 %v550, %v548
      %v552 = vsel %vm481, %v516, 2147483647
      %v553 = vand.u32 %v552, 65535
      %v554 = vshra.s32 %v552, 16
      %v555 = vcvt.s32.f32 %v553
      %v556 = vcvt.s32.f32 %v554
      %557 = vmin.xlane.f32.xlu0 %v556
      %v558 = vpop.xlane.xlu0 %557
      %vm559 = vcmp.eq.f32.partialorder %v556, %v558
      %v560 = vsel %vm559, %v555, inf
      %561 = vmin.xlane.f32.xlu0 %v560
      %v562 = vpop.xlane.xlu0 %561
      %v563 = vcvt.f32.s32 %v562
      %v564 = vcvt.f32.s32 %v558
      %v565 = vshll.u32 %v564, 16
      %v566 = vadd.s32 %v565, %v563
      %v567 = vsel %vm481, %v517, 2147483647
      %v568 = vand.u32 %v567, 65535
      %v569 = vshra.s32 %v567, 16
      %v570 = vcvt.s32.f32 %v568
      %v571 = vcvt.s32.f32 %v569
      %572 = vmin.xlane.f32.xlu0 %v571
      %v573 = vpop.xlane.xlu0 %572
      %vm574 = vcmp.eq.f32.partialorder %v571, %v573
      %v575 = vsel %vm574, %v570, inf
      %576 = vmin.xlane.f32.xlu0 %v575
      %v577 = vpop.xlane.xlu0 %576
      %v578 = vcvt.f32.s32 %v577
      %v579 = vcvt.f32.s32 %v573
      %v580 = vshll.u32 %v579, 16
      %v581 = vadd.s32 %v580, %v578
      %v582 = vsel %vm481, %v518, 2147483647
      %v583 = vand.u32 %v582, 65535
      %v584 = vshra.s32 %v582, 16
      %v585 = vcvt.s32.f32 %v583
      %v586 = vcvt.s32.f32 %v584
      %587 = vmin.xlane.f32.xlu0 %v586
      %v588 = vpop.xlane.xlu0 %587
      %vm589 = vcmp.eq.f32.partialorder %v586, %v588
      %v590 = vsel %vm589, %v585, inf
      %591 = vmin.xlane.f32.xlu0 %v590
      %v592 = vpop.xlane.xlu0 %591
      %v593 = vcvt.f32.s32 %v592
      %v594 = vcvt.f32.s32 %v588
      %v595 = vshll.u32 %v594, 16
      %v596 = vadd.s32 %v595, %v593
      %v597 = vsel %vm481, %v519, 2147483647
      %v598 = vand.u32 %v597, 65535
      %v599 = vshra.s32 %v597, 16
      %v600 = vcvt.s32.f32 %v598
      %v601 = vcvt.s32.f32 %v599
      %602 = vmin.xlane.f32.xlu0 %v601
      %v603 = vpop.xlane.xlu0 %602
      %vm604 = vcmp.eq.f32.partialorder %v601, %v603
      %v605 = vsel %vm604, %v600, inf
      %606 = vmin.xlane.f32.xlu0 %v605
      %v607 = vpop.xlane.xlu0 %606
      %v608 = vcvt.f32.s32 %v607
      %v609 = vcvt.f32.s32 %v603
      %v610 = vshll.u32 %v609, 16
      %v611 = vadd.s32 %v610, %v608
      %v612 = vsel %vm481, %v520, 2147483647
      %v613 = vand.u32 %v612, 65535
      %v614 = vshra.s32 %v612, 16
      %v615 = vcvt.s32.f32 %v613
      %v616 = vcvt.s32.f32 %v614
      %617 = vmin.xlane.f32.xlu0 %v616
      %v618 = vpop.xlane.xlu0 %617
      %vm619 = vcmp.eq.f32.partialorder %v616, %v618
      %v620 = vsel %vm619, %v615, inf
      %621 = vmin.xlane.f32.xlu0 %v620
      %v622 = vpop.xlane.xlu0 %621
      %v623 = vcvt.f32.s32 %v622
      %v624 = vcvt.f32.s32 %v618
      %v625 = vshll.u32 %v624, 16
      %v626 = vadd.s32 %v625, %v623
      %v627 = vsel %vm481, %v521, 2147483647
      %v628 = vand.u32 %v627, 65535
      %v629 = vshra.s32 %v627, 16
      %v630 = vcvt.s32.f32 %v628
      %v631 = vcvt.s32.f32 %v629
      %632 = vmin.xlane.f32.xlu0 %v631
      %v633 = vpop.xlane.xlu0 %632
      %vm634 = vcmp.eq.f32.partialorder %v631, %v633
      %v635 = vsel %vm634, %v630, inf
      %636 = vmin.xlane.f32.xlu0 %v635
      %v637 = vpop.xlane.xlu0 %636
      %v638 = vcvt.f32.s32 %v637
      %v639 = vcvt.f32.s32 %v633
      %v640 = vshll.u32 %v639, 16
      %v641 = vadd.s32 %v640, %v638
      %vm642 = vcmp.eq.s32.totalorder %v480, 0
      %v643 = vsel %vm642, %v536, 0
      %v644 = vsel %vm642, %v551, 0
      %v645 = vsel %vm642, %v566, 0
      %v646 = vsel %vm642, %v581, 0
      %v647 = vsel %vm642, %v596, 0
      %v648 = vsel %vm642, %v611, 0
      %v649 = vsel %vm642, %v626, 0
      %v650 = vsel %vm642, %v641, 0
      %vm651 = vcmp.eq.s32.totalorder %v480, %v536
      %vm652 = vcmp.eq.s32.totalorder %v480, %v551
      %vm653 = vcmp.eq.s32.totalorder %v480, %v566
      %vm654 = vcmp.eq.s32.totalorder %v480, %v581
      %vm655 = vcmp.eq.s32.totalorder %v480, %v596
      %vm656 = vcmp.eq.s32.totalorder %v480, %v611
      %vm657 = vcmp.eq.s32.totalorder %v480, %v626
      %vm658 = vcmp.eq.s32.totalorder %v480, %v641
      %v659 = vsel %vm651, inf, %v441
      %v660 = vsel %vm652, inf, %v446
      %v661 = vsel %vm653, inf, %v451
      %v662 = vsel %vm654, inf, %v456
      %v663 = vsel %vm655, inf, %v461
      %v664 = vsel %vm656, inf, %v466
      %v665 = vsel %vm657, inf, %v471
      %v666 = vsel %vm658, inf, %v476
      %v667 = vsel %vm481, %v659, inf
      %668 = vmin.xlane.f32.xlu0 %v667
      %v669 = vpop.xlane.xlu0 %668
      %v670 = vsel %vm481, %v660, inf
      %671 = vmin.xlane.f32.xlu0 %v670
      %v672 = vpop.xlane.xlu0 %671
      %v673 = vsel %vm481, %v661, inf
      %674 = vmin.xlane.f32.xlu0 %v673
      %v675 = vpop.xlane.xlu0 %674
      %v676 = vsel %vm481, %v662, inf
      %677 = vmin.xlane.f32.xlu0 %v676
      %v678 = vpop.xlane.xlu0 %677
      %v679 = vsel %vm481, %v663, inf
      %680 = vmin.xlane.f32.xlu0 %v679
      %v681 = vpop.xlane.xlu0 %680
      %v682 = vsel %vm481, %v664, inf
      %683 = vmin.xlane.f32.xlu0 %v682
      %v684 = vpop.xlane.xlu0 %683
      %v685 = vsel %vm481, %v665, inf
      %686 = vmin.xlane.f32.xlu0 %v685
      %v687 = vpop.xlane.xlu0 %686
      %v688 = vsel %vm481, %v666, inf
      %689 = vmin.xlane.f32.xlu0 %v688
      %v690 = vpop.xlane.xlu0 %689
      %vm691 = vcmp.le.f32.partialorder %v659, %v669
      %vm692 = vcmp.le.f32.partialorder %v660, %v672
      %vm693 = vcmp.le.f32.partialorder %v661, %v675
      %vm694 = vcmp.le.f32.partialorder %v662, %v678
      %vm695 = vcmp.le.f32.partialorder %v663, %v681
      %vm696 = vcmp.le.f32.partialorder %v664, %v684
      %vm697 = vcmp.le.f32.partialorder %v665, %v687
      %vm698 = vcmp.le.f32.partialorder %v666, %v690
      %v699 = vsel %vm691, %v480, 64
      %v700 = vsel %vm692, %v480, 64
      %v701 = vsel %vm693, %v480, 64
      %v702 = vsel %vm694, %v480, 64
      %v703 = vsel %vm695, %v480, 64
      %v704 = vsel %vm696, %v480, 64
      %v705 = vsel %vm697, %v480, 64
      %v706 = vsel %vm698, %v480, 64
      %v707 = vsel %vm481, %v699, 2147483647
      %v708 = vand.u32 %v707, 65535
      %v709 = vshra.s32 %v707, 16
      %v710 = vcvt.s32.f32 %v708
      %v711 = vcvt.s32.f32 %v709
      %712 = vmin.xlane.f32.xlu0 %v711
      %v713 = vpop.xlane.xlu0 %712
      %vm714 = vcmp.eq.f32.partialorder %v711, %v713
      %v715 = vsel %vm714, %v710, inf
      %716 = vmin.xlane.f32.xlu0 %v715
      %v717 = vpop.xlane.xlu0 %716
      %v718 = vcvt.f32.s32 %v717
      %v719 = vcvt.f32.s32 %v713
      %v720 = vshll.u32 %v719, 16
      %v721 = vadd.s32 %v720, %v718
      %v722 = vsel %vm481, %v700, 2147483647
      %v723 = vand.u32 %v722, 65535
      %v724 = vshra.s32 %v722, 16
      %v725 = vcvt.s32.f32 %v723
      %v726 = vcvt.s32.f32 %v724
      %727 = vmin.xlane.f32.xlu0 %v726
      %v728 = vpop.xlane.xlu0 %727
      %vm729 = vcmp.eq.f32.partialorder %v726, %v728
      %v730 = vsel %vm729, %v725, inf
      %731 = vmin.xlane.f32.xlu0 %v730
      %v732 = vpop.xlane.xlu0 %731
      %v733 = vcvt.f32.s32 %v732
      %v734 = vcvt.f32.s32 %v728
      %v735 = vshll.u32 %v734, 16
      %v736 = vadd.s32 %v735, %v733
      %v737 = vsel %vm481, %v701, 2147483647
      %v738 = vand.u32 %v737, 65535
      %v739 = vshra.s32 %v737, 16
      %v740 = vcvt.s32.f32 %v738
      %v741 = vcvt.s32.f32 %v739
      %742 = vmin.xlane.f32.xlu0 %v741
      %v743 = vpop.xlane.xlu0 %742
      %vm744 = vcmp.eq.f32.partialorder %v741, %v743
      %v745 = vsel %vm744, %v740, inf
      %746 = vmin.xlane.f32.xlu0 %v745
      %v747 = vpop.xlane.xlu0 %746
      %v748 = vcvt.f32.s32 %v747
      %v749 = vcvt.f32.s32 %v743
      %v750 = vshll.u32 %v749, 16
      %v751 = vadd.s32 %v750, %v748
      %v752 = vsel %vm481, %v702, 2147483647
      %v753 = vand.u32 %v752, 65535
      %v754 = vshra.s32 %v752, 16
      %v755 = vcvt.s32.f32 %v753
      %v756 = vcvt.s32.f32 %v754
      %757 = vmin.xlane.f32.xlu0 %v756
      %v758 = vpop.xlane.xlu0 %757
      %vm759 = vcmp.eq.f32.partialorder %v756, %v758
      %v760 = vsel %vm759, %v755, inf
      %761 = vmin.xlane.f32.xlu0 %v760
      %v762 = vpop.xlane.xlu0 %761
      %v763 = vcvt.f32.s32 %v762
      %v764 = vcvt.f32.s32 %v758
      %v765 = vshll.u32 %v764, 16
      %v766 = vadd.s32 %v765, %v763
      %v767 = vsel %vm481, %v703, 2147483647
      %v768 = vand.u32 %v767, 65535
      %v769 = vshra.s32 %v767, 16
      %v770 = vcvt.s32.f32 %v768
      %v771 = vcvt.s32.f32 %v769
      %772 = vmin.xlane.f32.xlu0 %v771
      %v773 = vpop.xlane.xlu0 %772
      %vm774 = vcmp.eq.f32.partialorder %v771, %v773
      %v775 = vsel %vm774, %v770, inf
      %776 = vmin.xlane.f32.xlu0 %v775
      %v777 = vpop.xlane.xlu0 %776
      %v778 = vcvt.f32.s32 %v777
      %v779 = vcvt.f32.s32 %v773
      %v780 = vshll.u32 %v779, 16
      %v781 = vadd.s32 %v780, %v778
      %v782 = vsel %vm481, %v704, 2147483647
      %v783 = vand.u32 %v782, 65535
      %v784 = vshra.s32 %v782, 16
      %v785 = vcvt.s32.f32 %v783
      %v786 = vcvt.s32.f32 %v784
      %787 = vmin.xlane.f32.xlu0 %v786
      %v788 = vpop.xlane.xlu0 %787
      %vm789 = vcmp.eq.f32.partialorder %v786, %v788
      %v790 = vsel %vm789, %v785, inf
      %791 = vmin.xlane.f32.xlu0 %v790
      %v792 = vpop.xlane.xlu0 %791
      %v793 = vcvt.f32.s32 %v792
      %v794 = vcvt.f32.s32 %v788
      %v795 = vshll.u32 %v794, 16
      %v796 = vadd.s32 %v795, %v793
      %v797 = vsel %vm481, %v705, 2147483647
      %v798 = vand.u32 %v797, 65535
      %v799 = vshra.s32 %v797, 16
      %v800 = vcvt.s32.f32 %v798
      %v801 = vcvt.s32.f32 %v799
      %802 = vmin.xlane.f32.xlu0 %v801
      %v803 = vpop.xlane.xlu0 %802
      %vm804 = vcmp.eq.f32.partialorder %v801, %v803
      %v805 = vsel %vm804, %v800, inf
      %806 = vmin.xlane.f32.xlu0 %v805
      %v807 = vpop.xlane.xlu0 %806
      %v808 = vcvt.f32.s32 %v807
      %v809 = vcvt.f32.s32 %v803
      %v810 = vshll.u32 %v809, 16
      %v811 = vadd.s32 %v810, %v808
      %v812 = vsel %vm481, %v706, 2147483647
      %v813 = vand.u32 %v812, 65535
      %v814 = vshra.s32 %v812, 16
      %v815 = vcvt.s32.f32 %v813
      %v816 = vcvt.s32.f32 %v814
      %817 = vmin.xlane.f32.xlu0 %v816
      %v818 = vpop.xlane.xlu0 %817
      %vm819 = vcmp.eq.f32.partialorder %v816, %v818
      %v820 = vsel %vm819, %v815, inf
      %821 = vmin.xlane.f32.xlu0 %v820
      %v822 = vpop.xlane.xlu0 %821
      %v823 = vcvt.f32.s32 %v822
      %v824 = vcvt.f32.s32 %v818
      %v825 = vshll.u32 %v824, 16
      %v826 = vadd.s32 %v825, %v823
      %vm827 = vcmp.eq.s32.totalorder %v480, 1
      %v828 = vsel %vm827, %v721, %v643
      %v829 = vsel %vm827, %v736, %v644
      %v830 = vsel %vm827, %v751, %v645
      %v831 = vsel %vm827, %v766, %v646
      %v832 = vsel %vm827, %v781, %v647
      %v833 = vsel %vm827, %v796, %v648
      %v834 = vsel %vm827, %v811, %v649
      %v835 = vsel %vm827, %v826, %v650
      %vm836 = vcmp.eq.s32.totalorder %v480, %v721
      %vm837 = vcmp.eq.s32.totalorder %v480, %v736
      %vm838 = vcmp.eq.s32.totalorder %v480, %v751
      %vm839 = vcmp.eq.s32.totalorder %v480, %v766
      %vm840 = vcmp.eq.s32.totalorder %v480, %v781
      %vm841 = vcmp.eq.s32.totalorder %v480, %v796
      %vm842 = vcmp.eq.s32.totalorder %v480, %v811
      %vm843 = vcmp.eq.s32.totalorder %v480, %v826
      %v844 = vsel %vm836, inf, %v659
      %v845 = vsel %vm837, inf, %v660
      %v846 = vsel %vm838, inf, %v661
      %v847 = vsel %vm839, inf, %v662
      %v848 = vsel %vm840, inf, %v663
      %v849 = vsel %vm841, inf, %v664
      %v850 = vsel %vm842, inf, %v665
      %v851 = vsel %vm843, inf, %v666
      %v852 = vsel %vm481, %v844, inf
      %853 = vmin.xlane.f32.xlu0 %v852
      %v854 = vpop.xlane.xlu0 %853
      %v855 = vsel %vm481, %v845, inf
      %856 = vmin.xlane.f32.xlu0 %v855
      %v857 = vpop.xlane.xlu0 %856
      %v858 = vsel %vm481, %v846, inf
      %859 = vmin.xlane.f32.xlu0 %v858
      %v860 = vpop.xlane.xlu0 %859
      %v861 = vsel %vm481, %v847, inf
      %862 = vmin.xlane.f32.xlu0 %v861
      %v863 = vpop.xlane.xlu0 %862
      %v864 = vsel %vm481, %v848, inf
      %865 = vmin.xlane.f32.xlu0 %v864
      %v866 = vpop.xlane.xlu0 %865
      %v867 = vsel %vm481, %v849, inf
      %868 = vmin.xlane.f32.xlu0 %v867
      %v869 = vpop.xlane.xlu0 %868
      %v870 = vsel %vm481, %v850, inf
      %871 = vmin.xlane.f32.xlu0 %v870
      %v872 = vpop.xlane.xlu0 %871
      %v873 = vsel %vm481, %v851, inf
      %874 = vmin.xlane.f32.xlu0 %v873
      %v875 = vpop.xlane.xlu0 %874
      %vm876 = vcmp.le.f32.partialorder %v844, %v854
      %vm877 = vcmp.le.f32.partialorder %v845, %v857
      %vm878 = vcmp.le.f32.partialorder %v846, %v860
      %vm879 = vcmp.le.f32.partialorder %v847, %v863
      %vm880 = vcmp.le.f32.partialorder %v848, %v866
      %vm881 = vcmp.le.f32.partialorder %v849, %v869
      %vm882 = vcmp.le.f32.partialorder %v850, %v872
      %vm883 = vcmp.le.f32.partialorder %v851, %v875
      %v884 = vsel %vm876, %v480, 64
      %v885 = vsel %vm877, %v480, 64
      %v886 = vsel %vm878, %v480, 64
      %v887 = vsel %vm879, %v480, 64
      %v888 = vsel %vm880, %v480, 64
      %v889 = vsel %vm881, %v480, 64
      %v890 = vsel %vm882, %v480, 64
      %v891 = vsel %vm883, %v480, 64
      %v892 = vsel %vm481, %v884, 2147483647
      %v893 = vand.u32 %v892, 65535
      %v894 = vshra.s32 %v892, 16
      %v895 = vcvt.s32.f32 %v893
      %v896 = vcvt.s32.f32 %v894
      %897 = vmin.xlane.f32.xlu0 %v896
      %v898 = vpop.xlane.xlu0 %897
      %vm899 = vcmp.eq.f32.partialorder %v896, %v898
      %v900 = vsel %vm899, %v895, inf
      %901 = vmin.xlane.f32.xlu0 %v900
      %v902 = vpop.xlane.xlu0 %901
      %v903 = vcvt.f32.s32 %v902
      %v904 = vcvt.f32.s32 %v898
      %v905 = vshll.u32 %v904, 16
      %v906 = vadd.s32 %v905, %v903
      %v907 = vsel %vm481, %v885, 2147483647
      %v908 = vand.u32 %v907, 65535
      %v909 = vshra.s32 %v907, 16
      %v910 = vcvt.s32.f32 %v908
      %v911 = vcvt.s32.f32 %v909
      %912 = vmin.xlane.f32.xlu0 %v911
      %v913 = vpop.xlane.xlu0 %912
      %vm914 = vcmp.eq.f32.partialorder %v911, %v913
      %v915 = vsel %vm914, %v910, inf
      %916 = vmin.xlane.f32.xlu0 %v915
      %v917 = vpop.xlane.xlu0 %916
      %v918 = vcvt.f32.s32 %v917
      %v919 = vcvt.f32.s32 %v913
      %v920 = vshll.u32 %v919, 16
      %v921 = vadd.s32 %v920, %v918
      %v922 = vsel %vm481, %v886, 2147483647
      %v923 = vand.u32 %v922, 65535
      %v924 = vshra.s32 %v922, 16
      %v925 = vcvt.s32.f32 %v923
      %v926 = vcvt.s32.f32 %v924
      %927 = vmin.xlane.f32.xlu0 %v926
      %v928 = vpop.xlane.xlu0 %927
      %vm929 = vcmp.eq.f32.partialorder %v926, %v928
      %v930 = vsel %vm929, %v925, inf
      %931 = vmin.xlane.f32.xlu0 %v930
      %v932 = vpop.xlane.xlu0 %931
      %v933 = vcvt.f32.s32 %v932
      %v934 = vcvt.f32.s32 %v928
      %v935 = vshll.u32 %v934, 16
      %v936 = vadd.s32 %v935, %v933
      %v937 = vsel %vm481, %v887, 2147483647
      %v938 = vand.u32 %v937, 65535
      %v939 = vshra.s32 %v937, 16
      %v940 = vcvt.s32.f32 %v938
      %v941 = vcvt.s32.f32 %v939
      %942 = vmin.xlane.f32.xlu0 %v941
      %v943 = vpop.xlane.xlu0 %942
      %vm944 = vcmp.eq.f32.partialorder %v941, %v943
      %v945 = vsel %vm944, %v940, inf
      %946 = vmin.xlane.f32.xlu0 %v945
      %v947 = vpop.xlane.xlu0 %946
      %v948 = vcvt.f32.s32 %v947
      %v949 = vcvt.f32.s32 %v943
      %v950 = vshll.u32 %v949, 16
      %v951 = vadd.s32 %v950, %v948
      %v952 = vsel %vm481, %v888, 2147483647
      %v953 = vand.u32 %v952, 65535
      %v954 = vshra.s32 %v952, 16
      %v955 = vcvt.s32.f32 %v953
      %v956 = vcvt.s32.f32 %v954
      %957 = vmin.xlane.f32.xlu0 %v956
      %v958 = vpop.xlane.xlu0 %957
      %vm959 = vcmp.eq.f32.partialorder %v956, %v958
      %v960 = vsel %vm959, %v955, inf
      %961 = vmin.xlane.f32.xlu0 %v960
      %v962 = vpop.xlane.xlu0 %961
      %v963 = vcvt.f32.s32 %v962
      %v964 = vcvt.f32.s32 %v958
      %v965 = vshll.u32 %v964, 16
      %v966 = vadd.s32 %v965, %v963
      %v967 = vsel %vm481, %v889, 2147483647
      %v968 = vand.u32 %v967, 65535
      %v969 = vshra.s32 %v967, 16
      %v970 = vcvt.s32.f32 %v968
      %v971 = vcvt.s32.f32 %v969
      %972 = vmin.xlane.f32.xlu0 %v971
      %v973 = vpop.xlane.xlu0 %972
      %vm974 = vcmp.eq.f32.partialorder %v971, %v973
      %v975 = vsel %vm974, %v970, inf
      %976 = vmin.xlane.f32.xlu0 %v975
      %v977 = vpop.xlane.xlu0 %976
      %v978 = vcvt.f32.s32 %v977
      %v979 = vcvt.f32.s32 %v973
      %v980 = vshll.u32 %v979, 16
      %v981 = vadd.s32 %v980, %v978
      %v982 = vsel %vm481, %v890, 2147483647
      %v983 = vand.u32 %v982, 65535
      %v984 = vshra.s32 %v982, 16
      %v985 = vcvt.s32.f32 %v983
      %v986 = vcvt.s32.f32 %v984
      %987 = vmin.xlane.f32.xlu0 %v986
      %v988 = vpop.xlane.xlu0 %987
      %vm989 = vcmp.eq.f32.partialorder %v986, %v988
      %v990 = vsel %vm989, %v985, inf
      %991 = vmin.xlane.f32.xlu0 %v990
      %v992 = vpop.xlane.xlu0 %991
      %v993 = vcvt.f32.s32 %v992
      %v994 = vcvt.f32.s32 %v988
      %v995 = vshll.u32 %v994, 16
      %v996 = vadd.s32 %v995, %v993
      %v997 = vsel %vm481, %v891, 2147483647
      %v998 = vand.u32 %v997, 65535
      %v999 = vshra.s32 %v997, 16
      %v1000 = vcvt.s32.f32 %v998
      %v1001 = vcvt.s32.f32 %v999
      %1002 = vmin.xlane.f32.xlu0 %v1001
      %v1003 = vpop.xlane.xlu0 %1002
      %vm1004 = vcmp.eq.f32.partialorder %v1001, %v1003
      %v1005 = vsel %vm1004, %v1000, inf
      %1006 = vmin.xlane.f32.xlu0 %v1005
      %v1007 = vpop.xlane.xlu0 %1006
      %v1008 = vcvt.f32.s32 %v1007
      %v1009 = vcvt.f32.s32 %v1003
      %v1010 = vshll.u32 %v1009, 16
      %v1011 = vadd.s32 %v1010, %v1008
      %vm1012 = vcmp.eq.s32.totalorder %v480, 2
      %v1013 = vsel %vm1012, %v906, %v828
      %v1014 = vsel %vm1012, %v921, %v829
      %v1015 = vsel %vm1012, %v936, %v830
      %v1016 = vsel %vm1012, %v951, %v831
      %v1017 = vsel %vm1012, %v966, %v832
      %v1018 = vsel %vm1012, %v981, %v833
      %v1019 = vsel %vm1012, %v996, %v834
      %v1020 = vsel %vm1012, %v1011, %v835
      %vm1021 = vcmp.eq.s32.totalorder %v480, %v906
      %vm1022 = vcmp.eq.s32.totalorder %v480, %v921
      %vm1023 = vcmp.eq.s32.totalorder %v480, %v936
      %vm1024 = vcmp.eq.s32.totalorder %v480, %v951
      %vm1025 = vcmp.eq.s32.totalorder %v480, %v966
      %vm1026 = vcmp.eq.s32.totalorder %v480, %v981
      %vm1027 = vcmp.eq.s32.totalorder %v480, %v996
      %vm1028 = vcmp.eq.s32.totalorder %v480, %v1011
      %v1029 = vsel %vm1021, inf, %v844
      %v1030 = vsel %vm1022, inf, %v845
      %v1031 = vsel %vm1023, inf, %v846
      %v1032 = vsel %vm1024, inf, %v847
      %v1033 = vsel %vm1025, inf, %v848
      %v1034 = vsel %vm1026, inf, %v849
      %v1035 = vsel %vm1027, inf, %v850
      %v1036 = vsel %vm1028, inf, %v851
      %v1037 = vsel %vm481, %v1029, inf
      %1038 = vmin.xlane.f32.xlu0 %v1037
      %v1039 = vpop.xlane.xlu0 %1038
      %v1040 = vsel %vm481, %v1030, inf
      %1041 = vmin.xlane.f32.xlu0 %v1040
      %v1042 = vpop.xlane.xlu0 %1041
      %v1043 = vsel %vm481, %v1031, inf
      %1044 = vmin.xlane.f32.xlu0 %v1043
      %v1045 = vpop.xlane.xlu0 %1044
      %v1046 = vsel %vm481, %v1032, inf
      %1047 = vmin.xlane.f32.xlu0 %v1046
      %v1048 = vpop.xlane.xlu0 %1047
      %v1049 = vsel %vm481, %v1033, inf
      %1050 = vmin.xlane.f32.xlu0 %v1049
      %v1051 = vpop.xlane.xlu0 %1050
      %v1052 = vsel %vm481, %v1034, inf
      %1053 = vmin.xlane.f32.xlu0 %v1052
      %v1054 = vpop.xlane.xlu0 %1053
      %v1055 = vsel %vm481, %v1035, inf
      %1056 = vmin.xlane.f32.xlu0 %v1055
      %v1057 = vpop.xlane.xlu0 %1056
      %v1058 = vsel %vm481, %v1036, inf
      %1059 = vmin.xlane.f32.xlu0 %v1058
      %v1060 = vpop.xlane.xlu0 %1059
      %vm1061 = vcmp.le.f32.partialorder %v1029, %v1039
      %vm1062 = vcmp.le.f32.partialorder %v1030, %v1042
      %vm1063 = vcmp.le.f32.partialorder %v1031, %v1045
      %vm1064 = vcmp.le.f32.partialorder %v1032, %v1048
      %vm1065 = vcmp.le.f32.partialorder %v1033, %v1051
      %vm1066 = vcmp.le.f32.partialorder %v1034, %v1054
      %vm1067 = vcmp.le.f32.partialorder %v1035, %v1057
      %vm1068 = vcmp.le.f32.partialorder %v1036, %v1060
      %v1069 = vsel %vm1061, %v480, 64
      %v1070 = vsel %vm1062, %v480, 64
      %v1071 = vsel %vm1063, %v480, 64
      %v1072 = vsel %vm1064, %v480, 64
      %v1073 = vsel %vm1065, %v480, 64
      %v1074 = vsel %vm1066, %v480, 64
      %v1075 = vsel %vm1067, %v480, 64
      %v1076 = vsel %vm1068, %v480, 64
      %v1077 = vsel %vm481, %v1069, 2147483647
      %v1078 = vand.u32 %v1077, 65535
      %v1079 = vshra.s32 %v1077, 16
      %v1080 = vcvt.s32.f32 %v1078
      %v1081 = vcvt.s32.f32 %v1079
      %1082 = vmin.xlane.f32.xlu0 %v1081
      %v1083 = vpop.xlane.xlu0 %1082
      %vm1084 = vcmp.eq.f32.partialorder %v1081, %v1083
      %v1085 = vsel %vm1084, %v1080, inf
      %1086 = vmin.xlane.f32.xlu0 %v1085
      %v1087 = vpop.xlane.xlu0 %1086
      %v1088 = vcvt.f32.s32 %v1087
      %v1089 = vcvt.f32.s32 %v1083
      %v1090 = vshll.u32 %v1089, 16
      %v1091 = vadd.s32 %v1090, %v1088
      %v1092 = vsel %vm481, %v1070, 2147483647
      %v1093 = vand.u32 %v1092, 65535
      %v1094 = vshra.s32 %v1092, 16
      %v1095 = vcvt.s32.f32 %v1093
      %v1096 = vcvt.s32.f32 %v1094
      %1097 = vmin.xlane.f32.xlu0 %v1096
      %v1098 = vpop.xlane.xlu0 %1097
      %vm1099 = vcmp.eq.f32.partialorder %v1096, %v1098
      %v1100 = vsel %vm1099, %v1095, inf
      %1101 = vmin.xlane.f32.xlu0 %v1100
      %v1102 = vpop.xlane.xlu0 %1101
      %v1103 = vcvt.f32.s32 %v1102
      %v1104 = vcvt.f32.s32 %v1098
      %v1105 = vshll.u32 %v1104, 16
      %v1106 = vadd.s32 %v1105, %v1103
      %v1107 = vsel %vm481, %v1071, 2147483647
      %v1108 = vand.u32 %v1107, 65535
      %v1109 = vshra.s32 %v1107, 16
      %v1110 = vcvt.s32.f32 %v1108
      %v1111 = vcvt.s32.f32 %v1109
      %1112 = vmin.xlane.f32.xlu0 %v1111
      %v1113 = vpop.xlane.xlu0 %1112
      %vm1114 = vcmp.eq.f32.partialorder %v1111, %v1113
      %v1115 = vsel %vm1114, %v1110, inf
      %1116 = vmin.xlane.f32.xlu0 %v1115
      %v1117 = vpop.xlane.xlu0 %1116
      %v1118 = vcvt.f32.s32 %v1117
      %v1119 = vcvt.f32.s32 %v1113
      %v1120 = vshll.u32 %v1119, 16
      %v1121 = vadd.s32 %v1120, %v1118
      %v1122 = vsel %vm481, %v1072, 2147483647
      %v1123 = vand.u32 %v1122, 65535
      %v1124 = vshra.s32 %v1122, 16
      %v1125 = vcvt.s32.f32 %v1123
      %v1126 = vcvt.s32.f32 %v1124
      %1127 = vmin.xlane.f32.xlu0 %v1126
      %v1128 = vpop.xlane.xlu0 %1127
      %vm1129 = vcmp.eq.f32.partialorder %v1126, %v1128
      %v1130 = vsel %vm1129, %v1125, inf
      %1131 = vmin.xlane.f32.xlu0 %v1130
      %v1132 = vpop.xlane.xlu0 %1131
      %v1133 = vcvt.f32.s32 %v1132
      %v1134 = vcvt.f32.s32 %v1128
      %v1135 = vshll.u32 %v1134, 16
      %v1136 = vadd.s32 %v1135, %v1133
      %v1137 = vsel %vm481, %v1073, 2147483647
      %v1138 = vand.u32 %v1137, 65535
      %v1139 = vshra.s32 %v1137, 16
      %v1140 = vcvt.s32.f32 %v1138
      %v1141 = vcvt.s32.f32 %v1139
      %1142 = vmin.xlane.f32.xlu0 %v1141
      %v1143 = vpop.xlane.xlu0 %1142
      %vm1144 = vcmp.eq.f32.partialorder %v1141, %v1143
      %v1145 = vsel %vm1144, %v1140, inf
      %1146 = vmin.xlane.f32.xlu0 %v1145
      %v1147 = vpop.xlane.xlu0 %1146
      %v1148 = vcvt.f32.s32 %v1147
      %v1149 = vcvt.f32.s32 %v1143
      %v1150 = vshll.u32 %v1149, 16
      %v1151 = vadd.s32 %v1150, %v1148
      %v1152 = vsel %vm481, %v1074, 2147483647
      %v1153 = vand.u32 %v1152, 65535
      %v1154 = vshra.s32 %v1152, 16
      %v1155 = vcvt.s32.f32 %v1153
      %v1156 = vcvt.s32.f32 %v1154
      %1157 = vmin.xlane.f32.xlu0 %v1156
      %v1158 = vpop.xlane.xlu0 %1157
      %vm1159 = vcmp.eq.f32.partialorder %v1156, %v1158
      %v1160 = vsel %vm1159, %v1155, inf
      %1161 = vmin.xlane.f32.xlu0 %v1160
      %v1162 = vpop.xlane.xlu0 %1161
      %v1163 = vcvt.f32.s32 %v1162
      %v1164 = vcvt.f32.s32 %v1158
      %v1165 = vshll.u32 %v1164, 16
      %v1166 = vadd.s32 %v1165, %v1163
      %v1167 = vsel %vm481, %v1075, 2147483647
      %v1168 = vand.u32 %v1167, 65535
      %v1169 = vshra.s32 %v1167, 16
      %v1170 = vcvt.s32.f32 %v1168
      %v1171 = vcvt.s32.f32 %v1169
      %1172 = vmin.xlane.f32.xlu0 %v1171
      %v1173 = vpop.xlane.xlu0 %1172
      %vm1174 = vcmp.eq.f32.partialorder %v1171, %v1173
      %v1175 = vsel %vm1174, %v1170, inf
      %1176 = vmin.xlane.f32.xlu0 %v1175
      %v1177 = vpop.xlane.xlu0 %1176
      %v1178 = vcvt.f32.s32 %v1177
      %v1179 = vcvt.f32.s32 %v1173
      %v1180 = vshll.u32 %v1179, 16
      %v1181 = vadd.s32 %v1180, %v1178
      %v1182 = vsel %vm481, %v1076, 2147483647
      %v1183 = vand.u32 %v1182, 65535
      %v1184 = vshra.s32 %v1182, 16
      %v1185 = vcvt.s32.f32 %v1183
      %v1186 = vcvt.s32.f32 %v1184
      %1187 = vmin.xlane.f32.xlu0 %v1186
      %v1188 = vpop.xlane.xlu0 %1187
      %vm1189 = vcmp.eq.f32.partialorder %v1186, %v1188
      %v1190 = vsel %vm1189, %v1185, inf
      %1191 = vmin.xlane.f32.xlu0 %v1190
      %v1192 = vpop.xlane.xlu0 %1191
      %v1193 = vcvt.f32.s32 %v1192
      %v1194 = vcvt.f32.s32 %v1188
      %v1195 = vshll.u32 %v1194, 16
      %v1196 = vadd.s32 %v1195, %v1193
      %vm1197 = vcmp.eq.s32.totalorder %v480, 3
      %v1198 = vsel %vm1197, %v1091, %v1013
      %v1199 = vsel %vm1197, %v1106, %v1014
      %v1200 = vsel %vm1197, %v1121, %v1015
      %v1201 = vsel %vm1197, %v1136, %v1016
      %v1202 = vsel %vm1197, %v1151, %v1017
      %v1203 = vsel %vm1197, %v1166, %v1018
      %v1204 = vsel %vm1197, %v1181, %v1019
      %v1205 = vsel %vm1197, %v1196, %v1020
      %vm1206 = vcmp.eq.s32.totalorder %v480, %v1091
      %vm1207 = vcmp.eq.s32.totalorder %v480, %v1106
      %vm1208 = vcmp.eq.s32.totalorder %v480, %v1121
      %vm1209 = vcmp.eq.s32.totalorder %v480, %v1136
      %vm1210 = vcmp.eq.s32.totalorder %v480, %v1151
      %vm1211 = vcmp.eq.s32.totalorder %v480, %v1166
      %vm1212 = vcmp.eq.s32.totalorder %v480, %v1181
      %vm1213 = vcmp.eq.s32.totalorder %v480, %v1196
      %v1214 = vsel %vm1206, inf, %v1029
      %v1215 = vsel %vm1207, inf, %v1030
      %v1216 = vsel %vm1208, inf, %v1031
      %v1217 = vsel %vm1209, inf, %v1032
      %v1218 = vsel %vm1210, inf, %v1033
      %v1219 = vsel %vm1211, inf, %v1034
      %v1220 = vsel %vm1212, inf, %v1035
      %v1221 = vsel %vm1213, inf, %v1036
      %v1222 = vsel %vm481, %v1214, inf
      %1223 = vmin.xlane.f32.xlu0 %v1222
      %v1224 = vpop.xlane.xlu0 %1223
      %v1225 = vsel %vm481, %v1215, inf
      %1226 = vmin.xlane.f32.xlu0 %v1225
      %v1227 = vpop.xlane.xlu0 %1226
      %v1228 = vsel %vm481, %v1216, inf
      %1229 = vmin.xlane.f32.xlu0 %v1228
      %v1230 = vpop.xlane.xlu0 %1229
      %v1231 = vsel %vm481, %v1217, inf
      %1232 = vmin.xlane.f32.xlu0 %v1231
      %v1233 = vpop.xlane.xlu0 %1232
      %v1234 = vsel %vm481, %v1218, inf
      %1235 = vmin.xlane.f32.xlu0 %v1234
      %v1236 = vpop.xlane.xlu0 %1235
      %v1237 = vsel %vm481, %v1219, inf
      %1238 = vmin.xlane.f32.xlu0 %v1237
      %v1239 = vpop.xlane.xlu0 %1238
      %v1240 = vsel %vm481, %v1220, inf
      %1241 = vmin.xlane.f32.xlu0 %v1240
      %v1242 = vpop.xlane.xlu0 %1241
      %v1243 = vsel %vm481, %v1221, inf
      %1244 = vmin.xlane.f32.xlu0 %v1243
      %v1245 = vpop.xlane.xlu0 %1244
      %vm1246 = vcmp.le.f32.partialorder %v1214, %v1224
      %vm1247 = vcmp.le.f32.partialorder %v1215, %v1227
      %vm1248 = vcmp.le.f32.partialorder %v1216, %v1230
      %vm1249 = vcmp.le.f32.partialorder %v1217, %v1233
      %vm1250 = vcmp.le.f32.partialorder %v1218, %v1236
      %vm1251 = vcmp.le.f32.partialorder %v1219, %v1239
      %vm1252 = vcmp.le.f32.partialorder %v1220, %v1242
      %vm1253 = vcmp.le.f32.partialorder %v1221, %v1245
      %v1254 = vsel %vm1246, %v480, 64
      %v1255 = vsel %vm1247, %v480, 64
      %v1256 = vsel %vm1248, %v480, 64
      %v1257 = vsel %vm1249, %v480, 64
      %v1258 = vsel %vm1250, %v480, 64
      %v1259 = vsel %vm1251, %v480, 64
      %v1260 = vsel %vm1252, %v480, 64
      %v1261 = vsel %vm1253, %v480, 64
      %v1262 = vsel %vm481, %v1254, 2147483647
      %v1263 = vand.u32 %v1262, 65535
      %v1264 = vshra.s32 %v1262, 16
      %v1265 = vcvt.s32.f32 %v1263
      %v1266 = vcvt.s32.f32 %v1264
      %1267 = vmin.xlane.f32.xlu0 %v1266
      %v1268 = vpop.xlane.xlu0 %1267
      %vm1269 = vcmp.eq.f32.partialorder %v1266, %v1268
      %v1270 = vsel %vm1269, %v1265, inf
      %1271 = vmin.xlane.f32.xlu0 %v1270
      %v1272 = vpop.xlane.xlu0 %1271
      %v1273 = vcvt.f32.s32 %v1272
      %v1274 = vcvt.f32.s32 %v1268
      %v1275 = vshll.u32 %v1274, 16
      %v1276 = vadd.s32 %v1275, %v1273
      %v1277 = vsel %vm481, %v1255, 2147483647
      %v1278 = vand.u32 %v1277, 65535
      %v1279 = vshra.s32 %v1277, 16
      %v1280 = vcvt.s32.f32 %v1278
      %v1281 = vcvt.s32.f32 %v1279
      %1282 = vmin.xlane.f32.xlu0 %v1281
      %v1283 = vpop.xlane.xlu0 %1282
      %vm1284 = vcmp.eq.f32.partialorder %v1281, %v1283
      %v1285 = vsel %vm1284, %v1280, inf
      %1286 = vmin.xlane.f32.xlu0 %v1285
      %v1287 = vpop.xlane.xlu0 %1286
      %v1288 = vcvt.f32.s32 %v1287
      %v1289 = vcvt.f32.s32 %v1283
      %v1290 = vshll.u32 %v1289, 16
      %v1291 = vadd.s32 %v1290, %v1288
      %v1292 = vsel %vm481, %v1256, 2147483647
      %v1293 = vand.u32 %v1292, 65535
      %v1294 = vshra.s32 %v1292, 16
      %v1295 = vcvt.s32.f32 %v1293
      %v1296 = vcvt.s32.f32 %v1294
      %1297 = vmin.xlane.f32.xlu0 %v1296
      %v1298 = vpop.xlane.xlu0 %1297
      %vm1299 = vcmp.eq.f32.partialorder %v1296, %v1298
      %v1300 = vsel %vm1299, %v1295, inf
      %1301 = vmin.xlane.f32.xlu0 %v1300
      %v1302 = vpop.xlane.xlu0 %1301
      %v1303 = vcvt.f32.s32 %v1302
      %v1304 = vcvt.f32.s32 %v1298
      %v1305 = vshll.u32 %v1304, 16
      %v1306 = vadd.s32 %v1305, %v1303
      %v1307 = vsel %vm481, %v1257, 2147483647
      %v1308 = vand.u32 %v1307, 65535
      %v1309 = vshra.s32 %v1307, 16
      %v1310 = vcvt.s32.f32 %v1308
      %v1311 = vcvt.s32.f32 %v1309
      %1312 = vmin.xlane.f32.xlu0 %v1311
      %v1313 = vpop.xlane.xlu0 %1312
      %vm1314 = vcmp.eq.f32.partialorder %v1311, %v1313
      %v1315 = vsel %vm1314, %v1310, inf
      %1316 = vmin.xlane.f32.xlu0 %v1315
      %v1317 = vpop.xlane.xlu0 %1316
      %v1318 = vcvt.f32.s32 %v1317
      %v1319 = vcvt.f32.s32 %v1313
      %v1320 = vshll.u32 %v1319, 16
      %v1321 = vadd.s32 %v1320, %v1318
      %v1322 = vsel %vm481, %v1258, 2147483647
      %v1323 = vand.u32 %v1322, 65535
      %v1324 = vshra.s32 %v1322, 16
      %v1325 = vcvt.s32.f32 %v1323
      %v1326 = vcvt.s32.f32 %v1324
      %1327 = vmin.xlane.f32.xlu0 %v1326
      %v1328 = vpop.xlane.xlu0 %1327
      %vm1329 = vcmp.eq.f32.partialorder %v1326, %v1328
      %v1330 = vsel %vm1329, %v1325, inf
      %1331 = vmin.xlane.f32.xlu0 %v1330
      %v1332 = vpop.xlane.xlu0 %1331
      %v1333 = vcvt.f32.s32 %v1332
      %v1334 = vcvt.f32.s32 %v1328
      %v1335 = vshll.u32 %v1334, 16
      %v1336 = vadd.s32 %v1335, %v1333
      %v1337 = vsel %vm481, %v1259, 2147483647
      %v1338 = vand.u32 %v1337, 65535
      %v1339 = vshra.s32 %v1337, 16
      %v1340 = vcvt.s32.f32 %v1338
      %v1341 = vcvt.s32.f32 %v1339
      %1342 = vmin.xlane.f32.xlu0 %v1341
      %v1343 = vpop.xlane.xlu0 %1342
      %vm1344 = vcmp.eq.f32.partialorder %v1341, %v1343
      %v1345 = vsel %vm1344, %v1340, inf
      %1346 = vmin.xlane.f32.xlu0 %v1345
      %v1347 = vpop.xlane.xlu0 %1346
      %v1348 = vcvt.f32.s32 %v1347
      %v1349 = vcvt.f32.s32 %v1343
      %v1350 = vshll.u32 %v1349, 16
      %v1351 = vadd.s32 %v1350, %v1348
      %v1352 = vsel %vm481, %v1260, 2147483647
      %v1353 = vand.u32 %v1352, 65535
      %v1354 = vshra.s32 %v1352, 16
      %v1355 = vcvt.s32.f32 %v1353
      %v1356 = vcvt.s32.f32 %v1354
      %1357 = vmin.xlane.f32.xlu0 %v1356
      %v1358 = vpop.xlane.xlu0 %1357
      %vm1359 = vcmp.eq.f32.partialorder %v1356, %v1358
      %v1360 = vsel %vm1359, %v1355, inf
      %1361 = vmin.xlane.f32.xlu0 %v1360
      %v1362 = vpop.xlane.xlu0 %1361
      %v1363 = vcvt.f32.s32 %v1362
      %v1364 = vcvt.f32.s32 %v1358
      %v1365 = vshll.u32 %v1364, 16
      %v1366 = vadd.s32 %v1365, %v1363
      %v1367 = vsel %vm481, %v1261, 2147483647
      %v1368 = vand.u32 %v1367, 65535
      %v1369 = vshra.s32 %v1367, 16
      %v1370 = vcvt.s32.f32 %v1368
      %v1371 = vcvt.s32.f32 %v1369
      %1372 = vmin.xlane.f32.xlu0 %v1371
      %v1373 = vpop.xlane.xlu0 %1372
      %vm1374 = vcmp.eq.f32.partialorder %v1371, %v1373
      %v1375 = vsel %vm1374, %v1370, inf
      %1376 = vmin.xlane.f32.xlu0 %v1375
      %v1377 = vpop.xlane.xlu0 %1376
      %v1378 = vcvt.f32.s32 %v1377
      %v1379 = vcvt.f32.s32 %v1373
      %v1380 = vshll.u32 %v1379, 16
      %v1381 = vadd.s32 %v1380, %v1378
      %vm1382 = vcmp.eq.s32.totalorder %v480, 4
      %v1383 = vsel %vm1382, %v1276, %v1198
      %v1384 = vsel %vm1382, %v1291, %v1199
      %v1385 = vsel %vm1382, %v1306, %v1200
      %v1386 = vsel %vm1382, %v1321, %v1201
      %v1387 = vsel %vm1382, %v1336, %v1202
      %v1388 = vsel %vm1382, %v1351, %v1203
      %v1389 = vsel %vm1382, %v1366, %v1204
      %v1390 = vsel %vm1382, %v1381, %v1205
      %vm1391 = vcmp.eq.s32.totalorder %v480, %v1276
      %vm1392 = vcmp.eq.s32.totalorder %v480, %v1291
      %vm1393 = vcmp.eq.s32.totalorder %v480, %v1306
      %vm1394 = vcmp.eq.s32.totalorder %v480, %v1321
      %vm1395 = vcmp.eq.s32.totalorder %v480, %v1336
      %vm1396 = vcmp.eq.s32.totalorder %v480, %v1351
      %vm1397 = vcmp.eq.s32.totalorder %v480, %v1366
      %vm1398 = vcmp.eq.s32.totalorder %v480, %v1381
      %v1399 = vsel %vm1391, inf, %v1214
      %v1400 = vsel %vm1392, inf, %v1215
      %v1401 = vsel %vm1393, inf, %v1216
      %v1402 = vsel %vm1394, inf, %v1217
      %v1403 = vsel %vm1395, inf, %v1218
      %v1404 = vsel %vm1396, inf, %v1219
      %v1405 = vsel %vm1397, inf, %v1220
      %v1406 = vsel %vm1398, inf, %v1221
      %v1407 = vsel %vm481, %v1399, inf
      %1408 = vmin.xlane.f32.xlu0 %v1407
      %v1409 = vpop.xlane.xlu0 %1408
      %v1410 = vsel %vm481, %v1400, inf
      %1411 = vmin.xlane.f32.xlu0 %v1410
      %v1412 = vpop.xlane.xlu0 %1411
      %v1413 = vsel %vm481, %v1401, inf
      %1414 = vmin.xlane.f32.xlu0 %v1413
      %v1415 = vpop.xlane.xlu0 %1414
      %v1416 = vsel %vm481, %v1402, inf
      %1417 = vmin.xlane.f32.xlu0 %v1416
      %v1418 = vpop.xlane.xlu0 %1417
      %v1419 = vsel %vm481, %v1403, inf
      %1420 = vmin.xlane.f32.xlu0 %v1419
      %v1421 = vpop.xlane.xlu0 %1420
      %v1422 = vsel %vm481, %v1404, inf
      %1423 = vmin.xlane.f32.xlu0 %v1422
      %v1424 = vpop.xlane.xlu0 %1423
      %v1425 = vsel %vm481, %v1405, inf
      %1426 = vmin.xlane.f32.xlu0 %v1425
      %v1427 = vpop.xlane.xlu0 %1426
      %v1428 = vsel %vm481, %v1406, inf
      %1429 = vmin.xlane.f32.xlu0 %v1428
      %v1430 = vpop.xlane.xlu0 %1429
      %vm1431 = vcmp.le.f32.partialorder %v1399, %v1409
      %vm1432 = vcmp.le.f32.partialorder %v1400, %v1412
      %vm1433 = vcmp.le.f32.partialorder %v1401, %v1415
      %vm1434 = vcmp.le.f32.partialorder %v1402, %v1418
      %vm1435 = vcmp.le.f32.partialorder %v1403, %v1421
      %vm1436 = vcmp.le.f32.partialorder %v1404, %v1424
      %vm1437 = vcmp.le.f32.partialorder %v1405, %v1427
      %vm1438 = vcmp.le.f32.partialorder %v1406, %v1430
      %v1439 = vsel %vm1431, %v480, 64
      %v1440 = vsel %vm1432, %v480, 64
      %v1441 = vsel %vm1433, %v480, 64
      %v1442 = vsel %vm1434, %v480, 64
      %v1443 = vsel %vm1435, %v480, 64
      %v1444 = vsel %vm1436, %v480, 64
      %v1445 = vsel %vm1437, %v480, 64
      %v1446 = vsel %vm1438, %v480, 64
      %v1447 = vsel %vm481, %v1439, 2147483647
      %v1448 = vand.u32 %v1447, 65535
      %v1449 = vshra.s32 %v1447, 16
      %v1450 = vcvt.s32.f32 %v1448
      %v1451 = vcvt.s32.f32 %v1449
      %1452 = vmin.xlane.f32.xlu0 %v1451
      %v1453 = vpop.xlane.xlu0 %1452
      %vm1454 = vcmp.eq.f32.partialorder %v1451, %v1453
      %v1455 = vsel %vm1454, %v1450, inf
      %1456 = vmin.xlane.f32.xlu0 %v1455
      %v1457 = vpop.xlane.xlu0 %1456
      %v1458 = vcvt.f32.s32 %v1457
      %v1459 = vcvt.f32.s32 %v1453
      %v1460 = vshll.u32 %v1459, 16
      %v1461 = vadd.s32 %v1460, %v1458
      %v1462 = vsel %vm481, %v1440, 2147483647
      %v1463 = vand.u32 %v1462, 65535
      %v1464 = vshra.s32 %v1462, 16
      %v1465 = vcvt.s32.f32 %v1463
      %v1466 = vcvt.s32.f32 %v1464
      %1467 = vmin.xlane.f32.xlu0 %v1466
      %v1468 = vpop.xlane.xlu0 %1467
      %vm1469 = vcmp.eq.f32.partialorder %v1466, %v1468
      %v1470 = vsel %vm1469, %v1465, inf
      %1471 = vmin.xlane.f32.xlu0 %v1470
      %v1472 = vpop.xlane.xlu0 %1471
      %v1473 = vcvt.f32.s32 %v1472
      %v1474 = vcvt.f32.s32 %v1468
      %v1475 = vshll.u32 %v1474, 16
      %v1476 = vadd.s32 %v1475, %v1473
      %v1477 = vsel %vm481, %v1441, 2147483647
      %v1478 = vand.u32 %v1477, 65535
      %v1479 = vshra.s32 %v1477, 16
      %v1480 = vcvt.s32.f32 %v1478
      %v1481 = vcvt.s32.f32 %v1479
      %1482 = vmin.xlane.f32.xlu0 %v1481
      %v1483 = vpop.xlane.xlu0 %1482
      %vm1484 = vcmp.eq.f32.partialorder %v1481, %v1483
      %v1485 = vsel %vm1484, %v1480, inf
      %1486 = vmin.xlane.f32.xlu0 %v1485
      %v1487 = vpop.xlane.xlu0 %1486
      %v1488 = vcvt.f32.s32 %v1487
      %v1489 = vcvt.f32.s32 %v1483
      %v1490 = vshll.u32 %v1489, 16
      %v1491 = vadd.s32 %v1490, %v1488
      %v1492 = vsel %vm481, %v1442, 2147483647
      %v1493 = vand.u32 %v1492, 65535
      %v1494 = vshra.s32 %v1492, 16
      %v1495 = vcvt.s32.f32 %v1493
      %v1496 = vcvt.s32.f32 %v1494
      %1497 = vmin.xlane.f32.xlu0 %v1496
      %v1498 = vpop.xlane.xlu0 %1497
      %vm1499 = vcmp.eq.f32.partialorder %v1496, %v1498
      %v1500 = vsel %vm1499, %v1495, inf
      %1501 = vmin.xlane.f32.xlu0 %v1500
      %v1502 = vpop.xlane.xlu0 %1501
      %v1503 = vcvt.f32.s32 %v1502
      %v1504 = vcvt.f32.s32 %v1498
      %v1505 = vshll.u32 %v1504, 16
      %v1506 = vadd.s32 %v1505, %v1503
      %v1507 = vsel %vm481, %v1443, 2147483647
      %v1508 = vand.u32 %v1507, 65535
      %v1509 = vshra.s32 %v1507, 16
      %v1510 = vcvt.s32.f32 %v1508
      %v1511 = vcvt.s32.f32 %v1509
      %1512 = vmin.xlane.f32.xlu0 %v1511
      %v1513 = vpop.xlane.xlu0 %1512
      %vm1514 = vcmp.eq.f32.partialorder %v1511, %v1513
      %v1515 = vsel %vm1514, %v1510, inf
      %1516 = vmin.xlane.f32.xlu0 %v1515
      %v1517 = vpop.xlane.xlu0 %1516
      %v1518 = vcvt.f32.s32 %v1517
      %v1519 = vcvt.f32.s32 %v1513
      %v1520 = vshll.u32 %v1519, 16
      %v1521 = vadd.s32 %v1520, %v1518
      %v1522 = vsel %vm481, %v1444, 2147483647
      %v1523 = vand.u32 %v1522, 65535
      %v1524 = vshra.s32 %v1522, 16
      %v1525 = vcvt.s32.f32 %v1523
      %v1526 = vcvt.s32.f32 %v1524
      %1527 = vmin.xlane.f32.xlu0 %v1526
      %v1528 = vpop.xlane.xlu0 %1527
      %vm1529 = vcmp.eq.f32.partialorder %v1526, %v1528
      %v1530 = vsel %vm1529, %v1525, inf
      %1531 = vmin.xlane.f32.xlu0 %v1530
      %v1532 = vpop.xlane.xlu0 %1531
      %v1533 = vcvt.f32.s32 %v1532
      %v1534 = vcvt.f32.s32 %v1528
      %v1535 = vshll.u32 %v1534, 16
      %v1536 = vadd.s32 %v1535, %v1533
      %v1537 = vsel %vm481, %v1445, 2147483647
      %v1538 = vand.u32 %v1537, 65535
      %v1539 = vshra.s32 %v1537, 16
      %v1540 = vcvt.s32.f32 %v1538
      %v1541 = vcvt.s32.f32 %v1539
      %1542 = vmin.xlane.f32.xlu0 %v1541
      %v1543 = vpop.xlane.xlu0 %1542
      %vm1544 = vcmp.eq.f32.partialorder %v1541, %v1543
      %v1545 = vsel %vm1544, %v1540, inf
      %1546 = vmin.xlane.f32.xlu0 %v1545
      %v1547 = vpop.xlane.xlu0 %1546
      %v1548 = vcvt.f32.s32 %v1547
      %v1549 = vcvt.f32.s32 %v1543
      %v1550 = vshll.u32 %v1549, 16
      %v1551 = vadd.s32 %v1550, %v1548
      %v1552 = vsel %vm481, %v1446, 2147483647
      %v1553 = vand.u32 %v1552, 65535
      %v1554 = vshra.s32 %v1552, 16
      %v1555 = vcvt.s32.f32 %v1553
      %v1556 = vcvt.s32.f32 %v1554
      %1557 = vmin.xlane.f32.xlu0 %v1556
      %v1558 = vpop.xlane.xlu0 %1557
      %vm1559 = vcmp.eq.f32.partialorder %v1556, %v1558
      %v1560 = vsel %vm1559, %v1555, inf
      %1561 = vmin.xlane.f32.xlu0 %v1560
      %v1562 = vpop.xlane.xlu0 %1561
      %v1563 = vcvt.f32.s32 %v1562
      %v1564 = vcvt.f32.s32 %v1558
      %v1565 = vshll.u32 %v1564, 16
      %v1566 = vadd.s32 %v1565, %v1563
      %vm1567 = vcmp.eq.s32.totalorder %v480, 5
      %v1568 = vsel %vm1567, %v1461, %v1383
      %v1569 = vsel %vm1567, %v1476, %v1384
      %v1570 = vsel %vm1567, %v1491, %v1385
      %v1571 = vsel %vm1567, %v1506, %v1386
      %v1572 = vsel %vm1567, %v1521, %v1387
      %v1573 = vsel %vm1567, %v1536, %v1388
      %v1574 = vsel %vm1567, %v1551, %v1389
      %v1575 = vsel %vm1567, %v1566, %v1390
      %vm1576 = vcmp.eq.s32.totalorder %v480, %v1461
      %vm1577 = vcmp.eq.s32.totalorder %v480, %v1476
      %vm1578 = vcmp.eq.s32.totalorder %v480, %v1491
      %vm1579 = vcmp.eq.s32.totalorder %v480, %v1506
      %vm1580 = vcmp.eq.s32.totalorder %v480, %v1521
      %vm1581 = vcmp.eq.s32.totalorder %v480, %v1536
      %vm1582 = vcmp.eq.s32.totalorder %v480, %v1551
      %vm1583 = vcmp.eq.s32.totalorder %v480, %v1566
      %v1584 = vsel %vm1576, inf, %v1399
      %v1585 = vsel %vm1577, inf, %v1400
      %v1586 = vsel %vm1578, inf, %v1401
      %v1587 = vsel %vm1579, inf, %v1402
      %v1588 = vsel %vm1580, inf, %v1403
      %v1589 = vsel %vm1581, inf, %v1404
      %v1590 = vsel %vm1582, inf, %v1405
      %v1591 = vsel %vm1583, inf, %v1406
      %v1592 = vsel %vm481, %v1584, inf
      %1593 = vmin.xlane.f32.xlu0 %v1592
      %v1594 = vpop.xlane.xlu0 %1593
      %v1595 = vsel %vm481, %v1585, inf
      %1596 = vmin.xlane.f32.xlu0 %v1595
      %v1597 = vpop.xlane.xlu0 %1596
      %v1598 = vsel %vm481, %v1586, inf
      %1599 = vmin.xlane.f32.xlu0 %v1598
      %v1600 = vpop.xlane.xlu0 %1599
      %v1601 = vsel %vm481, %v1587, inf
      %1602 = vmin.xlane.f32.xlu0 %v1601
      %v1603 = vpop.xlane.xlu0 %1602
      %v1604 = vsel %vm481, %v1588, inf
      %1605 = vmin.xlane.f32.xlu0 %v1604
      %v1606 = vpop.xlane.xlu0 %1605
      %v1607 = vsel %vm481, %v1589, inf
      %1608 = vmin.xlane.f32.xlu0 %v1607
      %v1609 = vpop.xlane.xlu0 %1608
      %v1610 = vsel %vm481, %v1590, inf
      %1611 = vmin.xlane.f32.xlu0 %v1610
      %v1612 = vpop.xlane.xlu0 %1611
      %v1613 = vsel %vm481, %v1591, inf
      %1614 = vmin.xlane.f32.xlu0 %v1613
      %v1615 = vpop.xlane.xlu0 %1614
      %vm1616 = vcmp.le.f32.partialorder %v1584, %v1594
      %vm1617 = vcmp.le.f32.partialorder %v1585, %v1597
      %vm1618 = vcmp.le.f32.partialorder %v1586, %v1600
      %vm1619 = vcmp.le.f32.partialorder %v1587, %v1603
      %vm1620 = vcmp.le.f32.partialorder %v1588, %v1606
      %vm1621 = vcmp.le.f32.partialorder %v1589, %v1609
      %vm1622 = vcmp.le.f32.partialorder %v1590, %v1612
      %vm1623 = vcmp.le.f32.partialorder %v1591, %v1615
      %v1624 = vsel %vm1616, %v480, 64
      %v1625 = vsel %vm1617, %v480, 64
      %v1626 = vsel %vm1618, %v480, 64
      %v1627 = vsel %vm1619, %v480, 64
      %v1628 = vsel %vm1620, %v480, 64
      %v1629 = vsel %vm1621, %v480, 64
      %v1630 = vsel %vm1622, %v480, 64
      %v1631 = vsel %vm1623, %v480, 64
      %v1632 = vsel %vm481, %v1624, 2147483647
      %v1633 = vand.u32 %v1632, 65535
      %v1634 = vshra.s32 %v1632, 16
      %v1635 = vcvt.s32.f32 %v1633
      %v1636 = vcvt.s32.f32 %v1634
      %1637 = vmin.xlane.f32.xlu0 %v1636
      %v1638 = vpop.xlane.xlu0 %1637
      %vm1639 = vcmp.eq.f32.partialorder %v1636, %v1638
      %v1640 = vsel %vm1639, %v1635, inf
      %1641 = vmin.xlane.f32.xlu0 %v1640
      %v1642 = vpop.xlane.xlu0 %1641
      %v1643 = vcvt.f32.s32 %v1642
      %v1644 = vcvt.f32.s32 %v1638
      %v1645 = vshll.u32 %v1644, 16
      %v1646 = vadd.s32 %v1645, %v1643
      %v1647 = vsel %vm481, %v1625, 2147483647
      %v1648 = vand.u32 %v1647, 65535
      %v1649 = vshra.s32 %v1647, 16
      %v1650 = vcvt.s32.f32 %v1648
      %v1651 = vcvt.s32.f32 %v1649
      %1652 = vmin.xlane.f32.xlu0 %v1651
      %v1653 = vpop.xlane.xlu0 %1652
      %vm1654 = vcmp.eq.f32.partialorder %v1651, %v1653
      %v1655 = vsel %vm1654, %v1650, inf
      %1656 = vmin.xlane.f32.xlu0 %v1655
      %v1657 = vpop.xlane.xlu0 %1656
      %v1658 = vcvt.f32.s32 %v1657
      %v1659 = vcvt.f32.s32 %v1653
      %v1660 = vshll.u32 %v1659, 16
      %v1661 = vadd.s32 %v1660, %v1658
      %v1662 = vsel %vm481, %v1626, 2147483647
      %v1663 = vand.u32 %v1662, 65535
      %v1664 = vshra.s32 %v1662, 16
      %v1665 = vcvt.s32.f32 %v1663
      %v1666 = vcvt.s32.f32 %v1664
      %1667 = vmin.xlane.f32.xlu0 %v1666
      %v1668 = vpop.xlane.xlu0 %1667
      %vm1669 = vcmp.eq.f32.partialorder %v1666, %v1668
      %v1670 = vsel %vm1669, %v1665, inf
      %1671 = vmin.xlane.f32.xlu0 %v1670
      %v1672 = vpop.xlane.xlu0 %1671
      %v1673 = vcvt.f32.s32 %v1672
      %v1674 = vcvt.f32.s32 %v1668
      %v1675 = vshll.u32 %v1674, 16
      %v1676 = vadd.s32 %v1675, %v1673
      %v1677 = vsel %vm481, %v1627, 2147483647
      %v1678 = vand.u32 %v1677, 65535
      %v1679 = vshra.s32 %v1677, 16
      %v1680 = vcvt.s32.f32 %v1678
      %v1681 = vcvt.s32.f32 %v1679
      %1682 = vmin.xlane.f32.xlu0 %v1681
      %v1683 = vpop.xlane.xlu0 %1682
      %vm1684 = vcmp.eq.f32.partialorder %v1681, %v1683
      %v1685 = vsel %vm1684, %v1680, inf
      %1686 = vmin.xlane.f32.xlu0 %v1685
      %v1687 = vpop.xlane.xlu0 %1686
      %v1688 = vcvt.f32.s32 %v1687
      %v1689 = vcvt.f32.s32 %v1683
      %v1690 = vshll.u32 %v1689, 16
      %v1691 = vadd.s32 %v1690, %v1688
      %v1692 = vsel %vm481, %v1628, 2147483647
      %v1693 = vand.u32 %v1692, 65535
      %v1694 = vshra.s32 %v1692, 16
      %v1695 = vcvt.s32.f32 %v1693
      %v1696 = vcvt.s32.f32 %v1694
      %1697 = vmin.xlane.f32.xlu0 %v1696
      %v1698 = vpop.xlane.xlu0 %1697
      %vm1699 = vcmp.eq.f32.partialorder %v1696, %v1698
      %v1700 = vsel %vm1699, %v1695, inf
      %1701 = vmin.xlane.f32.xlu0 %v1700
      %v1702 = vpop.xlane.xlu0 %1701
      %v1703 = vcvt.f32.s32 %v1702
      %v1704 = vcvt.f32.s32 %v1698
      %v1705 = vshll.u32 %v1704, 16
      %v1706 = vadd.s32 %v1705, %v1703
      %v1707 = vsel %vm481, %v1629, 2147483647
      %v1708 = vand.u32 %v1707, 65535
      %v1709 = vshra.s32 %v1707, 16
      %v1710 = vcvt.s32.f32 %v1708
      %v1711 = vcvt.s32.f32 %v1709
      %1712 = vmin.xlane.f32.xlu0 %v1711
      %v1713 = vpop.xlane.xlu0 %1712
      %vm1714 = vcmp.eq.f32.partialorder %v1711, %v1713
      %v1715 = vsel %vm1714, %v1710, inf
      %1716 = vmin.xlane.f32.xlu0 %v1715
      %v1717 = vpop.xlane.xlu0 %1716
      %v1718 = vcvt.f32.s32 %v1717
      %v1719 = vcvt.f32.s32 %v1713
      %v1720 = vshll.u32 %v1719, 16
      %v1721 = vadd.s32 %v1720, %v1718
      %v1722 = vsel %vm481, %v1630, 2147483647
      %v1723 = vand.u32 %v1722, 65535
      %v1724 = vshra.s32 %v1722, 16
      %v1725 = vcvt.s32.f32 %v1723
      %v1726 = vcvt.s32.f32 %v1724
      %1727 = vmin.xlane.f32.xlu0 %v1726
      %v1728 = vpop.xlane.xlu0 %1727
      %vm1729 = vcmp.eq.f32.partialorder %v1726, %v1728
      %v1730 = vsel %vm1729, %v1725, inf
      %1731 = vmin.xlane.f32.xlu0 %v1730
      %v1732 = vpop.xlane.xlu0 %1731
      %v1733 = vcvt.f32.s32 %v1732
      %v1734 = vcvt.f32.s32 %v1728
      %v1735 = vshll.u32 %v1734, 16
      %v1736 = vadd.s32 %v1735, %v1733
      %v1737 = vsel %vm481, %v1631, 2147483647
      %v1738 = vand.u32 %v1737, 65535
      %v1739 = vshra.s32 %v1737, 16
      %v1740 = vcvt.s32.f32 %v1738
      %v1741 = vcvt.s32.f32 %v1739
      %1742 = vmin.xlane.f32.xlu0 %v1741
      %v1743 = vpop.xlane.xlu0 %1742
      %vm1744 = vcmp.eq.f32.partialorder %v1741, %v1743
      %v1745 = vsel %vm1744, %v1740, inf
      %1746 = vmin.xlane.f32.xlu0 %v1745
      %v1747 = vpop.xlane.xlu0 %1746
      %v1748 = vcvt.f32.s32 %v1747
      %v1749 = vcvt.f32.s32 %v1743
      %v1750 = vshll.u32 %v1749, 16
      %v1751 = vadd.s32 %v1750, %v1748
      %vm1752 = vcmp.eq.s32.totalorder %v480, 6
      %v1753 = vsel %vm1752, %v1646, %v1568
      %v1754 = vsel %vm1752, %v1661, %v1569
      %v1755 = vsel %vm1752, %v1676, %v1570
      %v1756 = vsel %vm1752, %v1691, %v1571
      %v1757 = vsel %vm1752, %v1706, %v1572
      %v1758 = vsel %vm1752, %v1721, %v1573
      %v1759 = vsel %vm1752, %v1736, %v1574
      %v1760 = vsel %vm1752, %v1751, %v1575
      %vm1761 = vcmp.eq.s32.totalorder %v480, %v1646
      %vm1762 = vcmp.eq.s32.totalorder %v480, %v1661
      %vm1763 = vcmp.eq.s32.totalorder %v480, %v1676
      %vm1764 = vcmp.eq.s32.totalorder %v480, %v1691
      %vm1765 = vcmp.eq.s32.totalorder %v480, %v1706
      %vm1766 = vcmp.eq.s32.totalorder %v480, %v1721
      %vm1767 = vcmp.eq.s32.totalorder %v480, %v1736
      %vm1768 = vcmp.eq.s32.totalorder %v480, %v1751
      %v1769 = vsel %vm1761, inf, %v1584
      %v1770 = vsel %vm1762, inf, %v1585
      %v1771 = vsel %vm1763, inf, %v1586
      %v1772 = vsel %vm1764, inf, %v1587
      %v1773 = vsel %vm1765, inf, %v1588
      %v1774 = vsel %vm1766, inf, %v1589
      %v1775 = vsel %vm1767, inf, %v1590
      %v1776 = vsel %vm1768, inf, %v1591
      %v1777 = vsel %vm481, %v1769, inf
      %1778 = vmin.xlane.f32.xlu0 %v1777
      %v1779 = vpop.xlane.xlu0 %1778
      %v1780 = vsel %vm481, %v1770, inf
      %1781 = vmin.xlane.f32.xlu0 %v1780
      %v1782 = vpop.xlane.xlu0 %1781
      %v1783 = vsel %vm481, %v1771, inf
      %1784 = vmin.xlane.f32.xlu0 %v1783
      %v1785 = vpop.xlane.xlu0 %1784
      %v1786 = vsel %vm481, %v1772, inf
      %1787 = vmin.xlane.f32.xlu0 %v1786
      %v1788 = vpop.xlane.xlu0 %1787
      %v1789 = vsel %vm481, %v1773, inf
      %1790 = vmin.xlane.f32.xlu0 %v1789
      %v1791 = vpop.xlane.xlu0 %1790
      %v1792 = vsel %vm481, %v1774, inf
      %1793 = vmin.xlane.f32.xlu0 %v1792
      %v1794 = vpop.xlane.xlu0 %1793
      %v1795 = vsel %vm481, %v1775, inf
      %1796 = vmin.xlane.f32.xlu0 %v1795
      %v1797 = vpop.xlane.xlu0 %1796
      %v1798 = vsel %vm481, %v1776, inf
      %1799 = vmin.xlane.f32.xlu0 %v1798
      %v1800 = vpop.xlane.xlu0 %1799
      %vm1801 = vcmp.le.f32.partialorder %v1769, %v1779
      %vm1802 = vcmp.le.f32.partialorder %v1770, %v1782
      %vm1803 = vcmp.le.f32.partialorder %v1771, %v1785
      %vm1804 = vcmp.le.f32.partialorder %v1772, %v1788
      %vm1805 = vcmp.le.f32.partialorder %v1773, %v1791
      %vm1806 = vcmp.le.f32.partialorder %v1774, %v1794
      %vm1807 = vcmp.le.f32.partialorder %v1775, %v1797
      %vm1808 = vcmp.le.f32.partialorder %v1776, %v1800
      %v1809 = vsel %vm1801, %v480, 64
      %v1810 = vsel %vm1802, %v480, 64
      %v1811 = vsel %vm1803, %v480, 64
      %v1812 = vsel %vm1804, %v480, 64
      %v1813 = vsel %vm1805, %v480, 64
      %v1814 = vsel %vm1806, %v480, 64
      %v1815 = vsel %vm1807, %v480, 64
      %v1816 = vsel %vm1808, %v480, 64
      %v1817 = vsel %vm481, %v1809, 2147483647
      %v1818 = vand.u32 %v1817, 65535
      %v1819 = vshra.s32 %v1817, 16
      %v1820 = vcvt.s32.f32 %v1818
      %v1821 = vcvt.s32.f32 %v1819
      %1822 = vmin.xlane.f32.xlu0 %v1821
      %v1823 = vpop.xlane.xlu0 %1822
      %vm1824 = vcmp.eq.f32.partialorder %v1821, %v1823
      %v1825 = vsel %vm1824, %v1820, inf
      %1826 = vmin.xlane.f32.xlu0 %v1825
      %v1827 = vpop.xlane.xlu0 %1826
      %v1828 = vcvt.f32.s32 %v1827
      %v1829 = vcvt.f32.s32 %v1823
      %v1830 = vshll.u32 %v1829, 16
      %v1831 = vadd.s32 %v1830, %v1828
      %v1832 = vsel %vm481, %v1810, 2147483647
      %v1833 = vand.u32 %v1832, 65535
      %v1834 = vshra.s32 %v1832, 16
      %v1835 = vcvt.s32.f32 %v1833
      %v1836 = vcvt.s32.f32 %v1834
      %1837 = vmin.xlane.f32.xlu0 %v1836
      %v1838 = vpop.xlane.xlu0 %1837
      %vm1839 = vcmp.eq.f32.partialorder %v1836, %v1838
      %v1840 = vsel %vm1839, %v1835, inf
      %1841 = vmin.xlane.f32.xlu0 %v1840
      %v1842 = vpop.xlane.xlu0 %1841
      %v1843 = vcvt.f32.s32 %v1842
      %v1844 = vcvt.f32.s32 %v1838
      %v1845 = vshll.u32 %v1844, 16
      %v1846 = vadd.s32 %v1845, %v1843
      %v1847 = vsel %vm481, %v1811, 2147483647
      %v1848 = vand.u32 %v1847, 65535
      %v1849 = vshra.s32 %v1847, 16
      %v1850 = vcvt.s32.f32 %v1848
      %v1851 = vcvt.s32.f32 %v1849
      %1852 = vmin.xlane.f32.xlu0 %v1851
      %v1853 = vpop.xlane.xlu0 %1852
      %vm1854 = vcmp.eq.f32.partialorder %v1851, %v1853
      %v1855 = vsel %vm1854, %v1850, inf
      %1856 = vmin.xlane.f32.xlu0 %v1855
      %v1857 = vpop.xlane.xlu0 %1856
      %v1858 = vcvt.f32.s32 %v1857
      %v1859 = vcvt.f32.s32 %v1853
      %v1860 = vshll.u32 %v1859, 16
      %v1861 = vadd.s32 %v1860, %v1858
      %v1862 = vsel %vm481, %v1812, 2147483647
      %v1863 = vand.u32 %v1862, 65535
      %v1864 = vshra.s32 %v1862, 16
      %v1865 = vcvt.s32.f32 %v1863
      %v1866 = vcvt.s32.f32 %v1864
      %1867 = vmin.xlane.f32.xlu0 %v1866
      %v1868 = vpop.xlane.xlu0 %1867
      %vm1869 = vcmp.eq.f32.partialorder %v1866, %v1868
      %v1870 = vsel %vm1869, %v1865, inf
      %1871 = vmin.xlane.f32.xlu0 %v1870
      %v1872 = vpop.xlane.xlu0 %1871
      %v1873 = vcvt.f32.s32 %v1872
      %v1874 = vcvt.f32.s32 %v1868
      %v1875 = vshll.u32 %v1874, 16
      %v1876 = vadd.s32 %v1875, %v1873
      %v1877 = vsel %vm481, %v1813, 2147483647
      %v1878 = vand.u32 %v1877, 65535
      %v1879 = vshra.s32 %v1877, 16
      %v1880 = vcvt.s32.f32 %v1878
      %v1881 = vcvt.s32.f32 %v1879
      %1882 = vmin.xlane.f32.xlu0 %v1881
      %v1883 = vpop.xlane.xlu0 %1882
      %vm1884 = vcmp.eq.f32.partialorder %v1881, %v1883
      %v1885 = vsel %vm1884, %v1880, inf
      %1886 = vmin.xlane.f32.xlu0 %v1885
      %v1887 = vpop.xlane.xlu0 %1886
      %v1888 = vcvt.f32.s32 %v1887
      %v1889 = vcvt.f32.s32 %v1883
      %v1890 = vshll.u32 %v1889, 16
      %v1891 = vadd.s32 %v1890, %v1888
      %v1892 = vsel %vm481, %v1814, 2147483647
      %v1893 = vand.u32 %v1892, 65535
      %v1894 = vshra.s32 %v1892, 16
      %v1895 = vcvt.s32.f32 %v1893
      %v1896 = vcvt.s32.f32 %v1894
      %1897 = vmin.xlane.f32.xlu0 %v1896
      %v1898 = vpop.xlane.xlu0 %1897
      %vm1899 = vcmp.eq.f32.partialorder %v1896, %v1898
      %v1900 = vsel %vm1899, %v1895, inf
      %1901 = vmin.xlane.f32.xlu0 %v1900
      %v1902 = vpop.xlane.xlu0 %1901
      %v1903 = vcvt.f32.s32 %v1902
      %v1904 = vcvt.f32.s32 %v1898
      %v1905 = vshll.u32 %v1904, 16
      %v1906 = vadd.s32 %v1905, %v1903
      %v1907 = vsel %vm481, %v1815, 2147483647
      %v1908 = vand.u32 %v1907, 65535
      %v1909 = vshra.s32 %v1907, 16
      %v1910 = vcvt.s32.f32 %v1908
      %v1911 = vcvt.s32.f32 %v1909
      %1912 = vmin.xlane.f32.xlu0 %v1911
      %v1913 = vpop.xlane.xlu0 %1912
      %vm1914 = vcmp.eq.f32.partialorder %v1911, %v1913
      %v1915 = vsel %vm1914, %v1910, inf
      %1916 = vmin.xlane.f32.xlu0 %v1915
      %v1917 = vpop.xlane.xlu0 %1916
      %v1918 = vcvt.f32.s32 %v1917
      %v1919 = vcvt.f32.s32 %v1913
      %v1920 = vshll.u32 %v1919, 16
      %v1921 = vadd.s32 %v1920, %v1918
      %v1922 = vsel %vm481, %v1816, 2147483647
      %v1923 = vand.u32 %v1922, 65535
      %v1924 = vshra.s32 %v1922, 16
      %v1925 = vcvt.s32.f32 %v1923
      %v1926 = vcvt.s32.f32 %v1924
      %1927 = vmin.xlane.f32.xlu0 %v1926
      %v1928 = vpop.xlane.xlu0 %1927
      %vm1929 = vcmp.eq.f32.partialorder %v1926, %v1928
      %v1930 = vsel %vm1929, %v1925, inf
      %1931 = vmin.xlane.f32.xlu0 %v1930
      %v1932 = vpop.xlane.xlu0 %1931
      %v1933 = vcvt.f32.s32 %v1932
      %v1934 = vcvt.f32.s32 %v1928
      %v1935 = vshll.u32 %v1934, 16
      %v1936 = vadd.s32 %v1935, %v1933
      %vm1937 = vcmp.eq.s32.totalorder %v480, 7
      %v1938 = vsel %vm1937, %v1831, %v1753
      %v1939 = vsel %vm1937, %v1846, %v1754
      %v1940 = vsel %vm1937, %v1861, %v1755
      %v1941 = vsel %vm1937, %v1876, %v1756
      %v1942 = vsel %vm1937, %v1891, %v1757
      %v1943 = vsel %vm1937, %v1906, %v1758
      %v1944 = vsel %vm1937, %v1921, %v1759
      %v1945 = vsel %vm1937, %v1936, %v1760
      %vm1946 = vcmask 64512
      %1947 = vst.msk [vmem:[%s201] sm:$0xff] %vm1946, %v1938
      %1948 = vst.msk [vmem:[%s201 + $0x8] sm:$0xff] %vm1946, %v1939
      %1949 = vst.msk [vmem:[%s201 + $0x10] sm:$0xff] %vm1946, %v1940
      %1950 = vst.msk [vmem:[%s201 + $0x18] sm:$0xff] %vm1946, %v1941
      %1951 = vst.msk [vmem:[%s201 + $0x20] sm:$0xff] %vm1946, %v1942
      %1952 = vst.msk [vmem:[%s201 + $0x28] sm:$0xff] %vm1946, %v1943
      %1953 = vst.msk [vmem:[%s201 + $0x30] sm:$0xff] %vm1946, %v1944
      %1954 = vst.msk [vmem:[%s201 + $0x38] sm:$0xff] %vm1946, %v1945
      %s1955 = smul.u32 8, %s18
      %p1956 = scmp.lt.s32.totalorder %s17, 1
      %s1957 = scalar_select %p1956, %s17, 1
      %p1958 = scmp.lt.s32.totalorder %s1955, 7
      %s1959 = scalar_select %p1958, %s1955, 7
      %s1960 = smul.addr %s1957, 8
      %s1961 = sadd.s32 %s1959, %s1960
      %s1962 = smul.addr %s1961, 8
      %s1963 = scalar_lea.vmem %s2, %s1962
      // Predicated region
      $region29: #{tpu_custom_call.1} parent=27 // pred_check
        %p1964 = pneg %p99
      $region30: #{tpu_custom_call.1} parent=27 // pred_check_branch
        %1966 = sbr.rel (%p1964) target = $region32
      $region31: #{tpu_custom_call.1} parent=27 // pred_region
        %s1967 = smul.u32 8, %s18
      $region32: #{tpu_custom_call.1} parent=27 // pred_fallthru
        _
    $region28: #{tpu_custom_call.1} parent=5 // pred_fallthru
      _
    %p1968 = scmp.le.s32.totalorder 2, %s8
    // Predicated region
    $region33: #{tpu_custom_call.1} parent=5 // pred_check
      %p1969 = pneg %p1968
    $region34: #{tpu_custom_call.1} parent=5 // pred_check_branch
      %1971 = sbr.rel (%p1969) target = $region36
    $region35: #{tpu_custom_call.1} parent=5 // pred_region
      %s1972 = ssub.s32 %s8, 2
      // Predicated region
      $region37: #{tpu_custom_call.1} parent=35 // pred_check
        %p1973 = pneg %p105
      $region38: #{tpu_custom_call.1} parent=35 // pred_check_branch
        %1975 = sbr.rel (%p1973) target = $region40
      $region39: #{tpu_custom_call.1} parent=35 // pred_region
        %s1976 = smul.u32 8, %s20
        %p1977 = scmp.lt.s32.totalorder %s19, 1
        %s1978 = scalar_select %p1977, %s19, 1
        %p1979 = scmp.lt.s32.totalorder %s1976, 7
        %s1980 = scalar_select %p1979, %s1976, 7
        %s1981 = smul.addr %s1978, 8
        %s1982 = sadd.s32 %s1980, %s1981
        %s1983 = smul.addr %s1982, 8
        %s1984 = scalar_lea.vmem %s2, %s1983
      $region40: #{tpu_custom_call.1} parent=35 // pred_fallthru
        _
    $region36: #{tpu_custom_call.1} parent=5 // pred_fallthru
      _
  $region6: #{tpu_custom_call.1} parent=0 // loop_footer
    %s12 = sadd.s32 1, %s8
  $region7: #{tpu_custom_call.1} parent=0 // loop_footer_branch
    %7 = sbr.rel target = $region3
  $region8: #{tpu_custom_call.1} parent=0 // loop_exit
    _

</llo_original>
